<compile_context>
chip_gen: v6e
topology: v6e:2x2x1
jax: 0.10.0
libtpu: 0.0.40
codegen_flags: <defaults>
</compile_context>

<pallas_src>
import jax
import jax.numpy as jnp
from jax.experimental import pallas as pl
from jax.experimental.pallas import tpu as pltpu


def _round_up(x, m):
    return ((x + m - 1) // m) * m


def _vmem_limit_bytes():
    # ~3/4 of physical VMEM: ~96 MiB on v5e/v6e (128 MiB), ~48 MiB on v7x (64 MiB/TC).
    try:
        cap = int(pltpu.get_tpu_info().vmem_capacity_bytes)
    except Exception:
        cap = 64 << 20
    return int(min((cap * 3) // 4, 96 << 20))


# ---------------------------------------------------------------------------
# Kernels
# ---------------------------------------------------------------------------
def _mlp_block(x_ref, w1, b1, w2, b2, o_ref):
    # x is already bf16; bf16 MXU matmuls with f32 accumulation, bias/ReLU on VPU in f32.
    h = jnp.dot(x_ref[...], w1, preferred_element_type=jnp.float32)
    h = jnp.maximum(h + b1, 0.0)
    o = jnp.dot(h.astype(jnp.bfloat16), w2, preferred_element_type=jnp.float32)
    o_ref[...] = (o + b2).astype(o_ref.dtype)


def _triplet_kernel(x1_ref, x2_ref, x3_ref, w1_ref, b1_ref, w2_ref, b2_ref,
                    o1_ref, o2_ref, o3_ref):
    # Shared weights stay resident in VMEM (constant index_map); applied to all
    # three inputs of the current row tile.
    w1, b1, w2, b2 = w1_ref[...], b1_ref[...], w2_ref[...], b2_ref[...]
    _mlp_block(x1_ref, w1, b1, w2, b2, o1_ref)
    _mlp_block(x2_ref, w1, b1, w2, b2, o2_ref)
    _mlp_block(x3_ref, w1, b1, w2, b2, o3_ref)


def _single_kernel(x_ref, w1_ref, b1_ref, w2_ref, b2_ref, o_ref):
    _mlp_block(x_ref, w1_ref[...], b1_ref[...], w2_ref[...], b2_ref[...], o_ref)


# ---------------------------------------------------------------------------
# Parameters
# ---------------------------------------------------------------------------
def init_params(key, d_in, hidden, d_out):
    k1, k2, k3, k4 = jax.random.split(key, 4)
    w1 = jax.random.normal(k1, (d_in, hidden), jnp.float32) * 0.02
    b1 = jax.random.normal(k2, (hidden,), jnp.float32) * 0.01
    w2 = jax.random.normal(k3, (hidden, d_out), jnp.float32) * 0.02
    b2 = jax.random.normal(k4, (d_out,), jnp.float32) * 0.01
    return (w1, b1, w2, b2)


def prepare_params(params):
    """Pad hidden/output dims to lane-dense multiples of 128 (exact, zero pad)
    and cast weight matrices to bf16 once. Biases stay f32."""
    w1, b1, w2, b2 = params
    d_in, hidden = w1.shape
    d_out = w2.shape[1]
    hp = _round_up(hidden, 128)
    dp = _round_up(d_out, 128)
    w1p = jnp.zeros((d_in, hp), jnp.bfloat16).at[:, :hidden].set(
        w1.astype(jnp.bfloat16))
    b1p = jnp.zeros((1, hp), jnp.float32).at[:, :hidden].set(
        b1.reshape(1, hidden).astype(jnp.float32))
    w2p = jnp.zeros((hp, dp), jnp.bfloat16).at[:hidden, :d_out].set(
        w2.astype(jnp.bfloat16))
    b2p = jnp.zeros((1, dp), jnp.float32).at[:, :d_out].set(
        b2.reshape(1, d_out).astype(jnp.float32))
    return (w1p, b1p, w2p, b2p), d_out


# ---------------------------------------------------------------------------
# Wrappers
# ---------------------------------------------------------------------------
def _row_tiling(b, tm):
    # Pad rows only to a sublane multiple of 8; let the last block be partial.
    rows = _round_up(b, 8)
    tm = _round_up(max(8, min(tm, rows)), 8)
    # Keep >=2 grid steps when possible so the "parallel" row axis can shard
    # across the two TensorCores on v7x.
    if rows >= 16 and tm >= rows:
        tm = _round_up((rows + 1) // 2, 8)
    grid_m = pl.cdiv(rows, tm)
    return rows, tm, grid_m


def _flatten_pad(x, rows):
    # flatten (torch .view(B, -1)) + bf16 cast + tiny sublane pad, fused by XLA.
    b = x.shape[0]
    xf = x.reshape(b, -1).astype(jnp.bfloat16)
    if rows != b:
        xf = jnp.pad(xf, ((0, rows - b), (0, 0)))
    return xf


def _resident(shape):
    # Constant index_map -> block loaded once, stays resident in VMEM.
    # TODO(synk): for very large d_in on v7x, add pipeline_mode=pl.Buffered(1)
    # to single-buffer the resident weight block and free per-TC VMEM.
    return pl.BlockSpec(shape, lambda i: (0, 0))


def triplet_net_forward(x1, x2, x3, padded_params, d_out, *, tm=512):
    """TripletNet.forward: returns (emb(x1), emb(x2), emb(x3))."""
    w1p, b1p, w2p, b2p = padded_params
    d_in, hp = w1p.shape
    dp = w2p.shape[1]
    b = x1.shape[0]

    rows, tm, grid_m = _row_tiling(b, tm)
    x1f = _flatten_pad(x1, rows)
    x2f = _flatten_pad(x2, rows)
    x3f = _flatten_pad(x3, rows)

    x_spec = pl.BlockSpec((tm, d_in), lambda i: (i, 0))
    o_spec = pl.BlockSpec((tm, dp), lambda i: (i, 0))

    flops = 3 * (2 * rows * d_in * hp + 2 * rows * hp * dp)
    bytes_accessed = (3 * rows * d_in * 2      # bf16 inputs
                      + 3 * rows * dp * 2      # bf16 outputs
                      + (d_in * hp + hp * dp) * 2
                      + (hp + dp) * 4)

    o1, o2, o3 = pl.pallas_call(
        _triplet_kernel,
        out_shape=tuple(jax.ShapeDtypeStruct((rows, dp), jnp.bfloat16)
                        for _ in range(3)),
        grid=(grid_m,),
        in_specs=[x_spec, x_spec, x_spec,
                  _resident((d_in, hp)), _resident((1, hp)),
                  _resident((hp, dp)), _resident((1, dp))],
        out_specs=(o_spec, o_spec, o_spec),
        compiler_params=pltpu.CompilerParams(
            dimension_semantics=("parallel",),
            vmem_limit_bytes=_vmem_limit_bytes()),
        cost_estimate=pl.CostEstimate(flops=flops, transcendentals=0,
                                      bytes_accessed=bytes_accessed),
    )(x1f, x2f, x3f, w1p, b1p, w2p, b2p)

    return o1[:b, :d_out], o2[:b, :d_out], o3[:b, :d_out]


def get_embedding(x, padded_params, d_out, *, tm=512):
    """TripletNet.get_embedding."""
    w1p, b1p, w2p, b2p = padded_params
    d_in, hp = w1p.shape
    dp = w2p.shape[1]
    b = x.shape[0]

    rows, tm, grid_m = _row_tiling(b, tm)
    xf = _flatten_pad(x, rows)

    flops = 2 * rows * d_in * hp + 2 * rows * hp * dp
    bytes_accessed = (rows * d_in * 2 + rows * dp * 2
                      + (d_in * hp + hp * dp) * 2 + (hp + dp) * 4)

    out = pl.pallas_call(
        _single_kernel,
        out_shape=jax.ShapeDtypeStruct((rows, dp), jnp.bfloat16),
        grid=(grid_m,),
        in_specs=[pl.BlockSpec((tm, d_in), lambda i: (i, 0)),
                  _resident((d_in, hp)), _resident((1, hp)),
                  _resident((hp, dp)), _resident((1, dp))],
        out_specs=pl.BlockSpec((tm, dp), lambda i: (i, 0)),
        compiler_params=pltpu.CompilerParams(
            dimension_semantics=("parallel",),
            vmem_limit_bytes=_vmem_limit_bytes()),
        cost_estimate=pl.CostEstimate(flops=flops, transcendentals=0,
                                      bytes_accessed=bytes_accessed),
    )(xf, w1p, b1p, w2p, b2p)
    return out[:b, :d_out]


if __name__ == "__main__":
    key = jax.random.PRNGKey(0)
    kx1, kx2, kx3, kp = jax.random.split(key, 4)

    # Small deterministic inputs: batch=2, channels=4, 16x16 spatial (NCHW).
    B, C, H, W = 2, 4, 16, 16
    D_IN = C * H * W            # 1024
    HIDDEN = 64                 # padded to 128 lanes inside prepare_params
    D_OUT = 32                  # padded to 128 lanes; sliced back on output

    x1 = jax.random.normal(kx1, (B, C, H, W), jnp.float32)
    x2 = jax.random.normal(kx2, (B, C, H, W), jnp.float32)
    x3 = jax.random.normal(kx3, (B, C, H, W), jnp.float32)
    params = init_params(kp, D_IN, HIDDEN, D_OUT)
    padded_params, d_out = prepare_params(params)

    o1, o2, o3 = triplet_net_forward(x1, x2, x3, padded_params, d_out)
    jax.block_until_ready((o1, o2, o3))

    e1 = get_embedding(x1, padded_params, d_out)
    jax.block_until_ready(e1)

    # Reference check against plain JAX f32 (same math as the PyTorch module).
    def ref_emb(x):
        w1, b1, w2, b2 = params
        h = jnp.maximum(x.reshape(x.shape[0], -1) @ w1 + b1, 0.0)
        return h @ w2 + b2

    r1, r2, r3 = ref_emb(x1), ref_emb(x2), ref_emb(x3)
    assert o1.shape == (B, D_OUT) and o2.shape == (B, D_OUT) and o3.shape == (B, D_OUT)
    # bf16 inputs/weights/outputs vs f32 reference -> loosened tolerance.
    assert jnp.allclose(o1.astype(jnp.float32), r1, atol=2e-2, rtol=2e-2)
    assert jnp.allclose(o2.astype(jnp.float32), r2, atol=2e-2, rtol=2e-2)
    assert jnp.allclose(o3.astype(jnp.float32), r3, atol=2e-2, rtol=2e-2)
    assert jnp.allclose(e1.astype(jnp.float32), r1, atol=2e-2, rtol=2e-2)

    print("KERNEL_OK")
</pallas_src>

<mosaic_0001>
module attributes {stable_mosaic.version = 11 : i64} {
  func.func @_triplet_kernel(%arg0: i32, %arg1: memref<8x1024xbf16, #tpu.memory_space<vmem>>, %arg2: memref<8x1024xbf16, #tpu.memory_space<vmem>>, %arg3: memref<8x1024xbf16, #tpu.memory_space<vmem>>, %arg4: memref<1024x128xbf16, #tpu.memory_space<vmem>>, %arg5: memref<1x128xf32, #tpu.memory_space<vmem>>, %arg6: memref<128x128xbf16, #tpu.memory_space<vmem>>, %arg7: memref<1x128xf32, #tpu.memory_space<vmem>>, %arg8: memref<8x128xbf16, #tpu.memory_space<vmem>>, %arg9: memref<8x128xbf16, #tpu.memory_space<vmem>>, %arg10: memref<8x128xbf16, #tpu.memory_space<vmem>>) attributes {dimension_semantics = [#tpu.dimension_semantics<parallel>], iteration_bounds = array<i64: 1>, scalar_prefetch = 0 : i64, scratch_operands = 0 : i64, tpu.core_type = #tpu.core_type<tc>, window_params = [{transform_indices = @transform_0, window_bounds = array<i64: 8, 1024>}, {transform_indices = @transform_1, window_bounds = array<i64: 8, 1024>}, {transform_indices = @transform_2, window_bounds = array<i64: 8, 1024>}, {pipeline_mode = #tpu.pipeline_mode<synchronous>, transform_indices = @transform_3, window_bounds = array<i64: 1024, 128>}, {pipeline_mode = #tpu.pipeline_mode<synchronous>, transform_indices = @transform_4, window_bounds = array<i64: 1, 128>}, {pipeline_mode = #tpu.pipeline_mode<synchronous>, transform_indices = @transform_5, window_bounds = array<i64: 128, 128>}, {pipeline_mode = #tpu.pipeline_mode<synchronous>, transform_indices = @transform_6, window_bounds = array<i64: 1, 128>}, {transform_indices = @transform_7, window_bounds = array<i64: 8, 128>}, {transform_indices = @transform_8, window_bounds = array<i64: 8, 128>}, {transform_indices = @transform_9, window_bounds = array<i64: 8, 128>}]} {
    %c0 = arith.constant 0 : index
    %c0_0 = arith.constant 0 : index
    %0 = vector.load %arg4[%c0, %c0_0] : memref<1024x128xbf16, #tpu.memory_space<vmem>>, vector<1024x128xbf16>
    %c0_1 = arith.constant 0 : index
    %c0_2 = arith.constant 0 : index
    %1 = vector.load %arg5[%c0_1, %c0_2] : memref<1x128xf32, #tpu.memory_space<vmem>>, vector<1x128xf32>
    %c0_3 = arith.constant 0 : index
    %c0_4 = arith.constant 0 : index
    %2 = vector.load %arg6[%c0_3, %c0_4] : memref<128x128xbf16, #tpu.memory_space<vmem>>, vector<128x128xbf16>
    %c0_5 = arith.constant 0 : index
    %c0_6 = arith.constant 0 : index
    %3 = vector.load %arg7[%c0_5, %c0_6] : memref<1x128xf32, #tpu.memory_space<vmem>>, vector<1x128xf32>
    %c0_7 = arith.constant 0 : index
    %c0_8 = arith.constant 0 : index
    %4 = vector.load %arg1[%c0_7, %c0_8] : memref<8x1024xbf16, #tpu.memory_space<vmem>>, vector<8x1024xbf16>
    %cst = arith.constant dense<0.000000e+00> : vector<8x128xf32>
    %5 = tpu.matmul %4, %0, %cst {dimension_numbers = #tpu.dot_dimension_numbers<[1], [0], [0], [1], [0, 0, 1, 1], [], []>} : vector<8x1024xbf16>, vector<1024x128xbf16>, vector<8x128xf32> -> vector<8x128xf32>
    %6 = vector.broadcast %1 : vector<1x128xf32> to vector<8x128xf32>
    %7 = arith.addf %5, %6 : vector<8x128xf32>
    %cst_9 = arith.constant 0.000000e+00 : f32
    %8 = vector.broadcast %cst_9 : f32 to vector<8x128xf32>
    %9 = arith.maximumf %7, %8 : vector<8x128xf32>
    %10 = arith.truncf %9 : vector<8x128xf32> to vector<8x128xbf16>
    %cst_10 = arith.constant dense<0.000000e+00> : vector<8x128xf32>
    %11 = tpu.matmul %10, %2, %cst_10 {dimension_numbers = #tpu.dot_dimension_numbers<[1], [0], [0], [1], [0, 0, 1, 1], [], []>} : vector<8x128xbf16>, vector<128x128xbf16>, vector<8x128xf32> -> vector<8x128xf32>
    %12 = vector.broadcast %3 : vector<1x128xf32> to vector<8x128xf32>
    %13 = arith.addf %11, %12 : vector<8x128xf32>
    %14 = arith.truncf %13 : vector<8x128xf32> to vector<8x128xbf16>
    %c0_11 = arith.constant 0 : index
    %c0_12 = arith.constant 0 : index
    %15 = vector.load %arg8[%c0_11, %c0_12] : memref<8x128xbf16, #tpu.memory_space<vmem>>, vector<8x128xbf16>
    tpu.vector_store %arg8[%c0_11, %c0_12], %14 {strides = array<i32>} : memref<8x128xbf16, #tpu.memory_space<vmem>>, vector<8x128xbf16>,
    %c0_13 = arith.constant 0 : index
    %c0_14 = arith.constant 0 : index
    %16 = vector.load %arg2[%c0_13, %c0_14] : memref<8x1024xbf16, #tpu.memory_space<vmem>>, vector<8x1024xbf16>
    %cst_15 = arith.constant dense<0.000000e+00> : vector<8x128xf32>
    %17 = tpu.matmul %16, %0, %cst_15 {dimension_numbers = #tpu.dot_dimension_numbers<[1], [0], [0], [1], [0, 0, 1, 1], [], []>} : vector<8x1024xbf16>, vector<1024x128xbf16>, vector<8x128xf32> -> vector<8x128xf32>
    %18 = vector.broadcast %1 : vector<1x128xf32> to vector<8x128xf32>
    %19 = arith.addf %17, %18 : vector<8x128xf32>
    %cst_16 = arith.constant 0.000000e+00 : f32
    %20 = vector.broadcast %cst_16 : f32 to vector<8x128xf32>
    %21 = arith.maximumf %19, %20 : vector<8x128xf32>
    %22 = arith.truncf %21 : vector<8x128xf32> to vector<8x128xbf16>
    %cst_17 = arith.constant dense<0.000000e+00> : vector<8x128xf32>
    %23 = tpu.matmul %22, %2, %cst_17 {dimension_numbers = #tpu.dot_dimension_numbers<[1], [0], [0], [1], [0, 0, 1, 1], [], []>} : vector<8x128xbf16>, vector<128x128xbf16>, vector<8x128xf32> -> vector<8x128xf32>
    %24 = vector.broadcast %3 : vector<1x128xf32> to vector<8x128xf32>
    %25 = arith.addf %23, %24 : vector<8x128xf32>
    %26 = arith.truncf %25 : vector<8x128xf32> to vector<8x128xbf16>
    %c0_18 = arith.constant 0 : index
    %c0_19 = arith.constant 0 : index
    %27 = vector.load %arg9[%c0_18, %c0_19] : memref<8x128xbf16, #tpu.memory_space<vmem>>, vector<8x128xbf16>
    tpu.vector_store %arg9[%c0_18, %c0_19], %26 {strides = array<i32>} : memref<8x128xbf16, #tpu.memory_space<vmem>>, vector<8x128xbf16>,
    %c0_20 = arith.constant 0 : index
    %c0_21 = arith.constant 0 : index
    %28 = vector.load %arg3[%c0_20, %c0_21] : memref<8x1024xbf16, #tpu.memory_space<vmem>>, vector<8x1024xbf16>
    %cst_22 = arith.constant dense<0.000000e+00> : vector<8x128xf32>
    %29 = tpu.matmul %28, %0, %cst_22 {dimension_numbers = #tpu.dot_dimension_numbers<[1], [0], [0], [1], [0, 0, 1, 1], [], []>} : vector<8x1024xbf16>, vector<1024x128xbf16>, vector<8x128xf32> -> vector<8x128xf32>
    %30 = vector.broadcast %1 : vector<1x128xf32> to vector<8x128xf32>
    %31 = arith.addf %29, %30 : vector<8x128xf32>
    %cst_23 = arith.constant 0.000000e+00 : f32
    %32 = vector.broadcast %cst_23 : f32 to vector<8x128xf32>
    %33 = arith.maximumf %31, %32 : vector<8x128xf32>
    %34 = arith.truncf %33 : vector<8x128xf32> to vector<8x128xbf16>
    %cst_24 = arith.constant dense<0.000000e+00> : vector<8x128xf32>
    %35 = tpu.matmul %34, %2, %cst_24 {dimension_numbers = #tpu.dot_dimension_numbers<[1], [0], [0], [1], [0, 0, 1, 1], [], []>} : vector<8x128xbf16>, vector<128x128xbf16>, vector<8x128xf32> -> vector<8x128xf32>
    %36 = vector.broadcast %3 : vector<1x128xf32> to vector<8x128xf32>
    %37 = arith.addf %35, %36 : vector<8x128xf32>
    %38 = arith.truncf %37 : vector<8x128xf32> to vector<8x128xbf16>
    %c0_25 = arith.constant 0 : index
    %c0_26 = arith.constant 0 : index
    %39 = vector.load %arg10[%c0_25, %c0_26] : memref<8x128xbf16, #tpu.memory_space<vmem>>, vector<8x128xbf16>
    tpu.vector_store %arg10[%c0_25, %c0_26], %38 {strides = array<i32>} : memref<8x128xbf16, #tpu.memory_space<vmem>>, vector<8x128xbf16>,
    return
  }
  func.func @transform_0(%arg0: i32) -> (i32, i32) {
    %c0_i32 = arith.constant 0 : i32
    %c0_i32_0 = arith.constant 0 : i32
    return %arg0, %c0_i32 : i32, i32
  }
  func.func @transform_1(%arg0: i32) -> (i32, i32) {
    %c0_i32 = arith.constant 0 : i32
    %c0_i32_0 = arith.constant 0 : i32
    return %arg0, %c0_i32 : i32, i32
  }
  func.func @transform_2(%arg0: i32) -> (i32, i32) {
    %c0_i32 = arith.constant 0 : i32
    %c0_i32_0 = arith.constant 0 : i32
    return %arg0, %c0_i32 : i32, i32
  }
  func.func @transform_3(%arg0: i32) -> (i32, i32) {
    %c0_i32 = arith.constant 0 : i32
    %c0_i32_0 = arith.constant 0 : i32
    %c0_i32_1 = arith.constant 0 : i32
    return %c0_i32, %c0_i32_0 : i32, i32
  }
  func.func @transform_4(%arg0: i32) -> (i32, i32) {
    %c0_i32 = arith.constant 0 : i32
    %c0_i32_0 = arith.constant 0 : i32
    %c0_i32_1 = arith.constant 0 : i32
    return %c0_i32, %c0_i32_0 : i32, i32
  }
  func.func @transform_5(%arg0: i32) -> (i32, i32) {
    %c0_i32 = arith.constant 0 : i32
    %c0_i32_0 = arith.constant 0 : i32
    %c0_i32_1 = arith.constant 0 : i32
    return %c0_i32, %c0_i32_0 : i32, i32
  }
  func.func @transform_6(%arg0: i32) -> (i32, i32) {
    %c0_i32 = arith.constant 0 : i32
    %c0_i32_0 = arith.constant 0 : i32
    %c0_i32_1 = arith.constant 0 : i32
    return %c0_i32, %c0_i32_0 : i32, i32
  }
  func.func @transform_7(%arg0: i32) -> (i32, i32) {
    %c0_i32 = arith.constant 0 : i32
    %c0_i32_0 = arith.constant 0 : i32
    return %arg0, %c0_i32 : i32, i32
  }
  func.func @transform_8(%arg0: i32) -> (i32, i32) {
    %c0_i32 = arith.constant 0 : i32
    %c0_i32_0 = arith.constant 0 : i32
    return %arg0, %c0_i32 : i32, i32
  }
  func.func @transform_9(%arg0: i32) -> (i32, i32) {
    %c0_i32 = arith.constant 0 : i32
    %c0_i32_0 = arith.constant 0 : i32
    return %arg0, %c0_i32 : i32, i32
  }
}

</mosaic_0001>

<llo_original>
// kernel: tpu_custom_call.1
$region0: #{tpu_custom_call.1}
  #allocation0 [shape = 'u32[]', space=smem, size = 0x4, offset = 0x4, fixed_abs, tag = 'smem constant byte address 0x4 - core index']
  #allocation1 [shape = 'u32[144,128]{1,0:T(1,128)}', space=vmem, size = 0x12000, scoped, tag = 'internal scratch']
  %s0 = inlined_call_operand.hbm [shape: bf16[8,1024], index: 0, kind: input, shape index: {}]
  %s1 = inlined_call_operand.hbm [shape: bf16[8,1024], index: 1, kind: input, shape index: {}]
  %s2 = inlined_call_operand.hbm [shape: bf16[8,1024], index: 2, kind: input, shape index: {}]
  %s3 = inlined_call_operand.hbm [shape: bf16[1024,128], index: 3, kind: input, shape index: {}]
  %s4 = inlined_call_operand.vmem [shape: f32[1,128], index: 4, kind: input, shape index: {}]
  %s5 = inlined_call_operand.hbm [shape: bf16[128,128], index: 5, kind: input, shape index: {}]
  %s6 = inlined_call_operand.vmem [shape: f32[1,128], index: 6, kind: input, shape index: {}]
  %s7 = inlined_call_operand.hbm [shape: bf16[8,128], index: 7, kind: output, shape index: {0}]
  %s8 = inlined_call_operand.hbm [shape: bf16[8,128], index: 8, kind: output, shape index: {1}]
  %s9 = inlined_call_operand.hbm [shape: bf16[8,128], index: 9, kind: output, shape index: {2}]
  %10 = xla_tuple %s7, %s8, %s9
  %s11 = sld [smem:[#allocation0]]
  $region74: #{tpu_custom_call.1} parent=0
    _
  %s13 = ssub.s32 1, %s11
  %s14 = scalar_select 0, %s13, %s11
  $region1: #{tpu_custom_call.1} parent=0
    #allocation2 [shape = 'u8[16384]{0}', space=vmem, size = 0x4000, scoped, tag = 'input window, operand 0, single buffered']
    #allocation3 [shape = 's32[1]{0}', space=sflag, size = 0x4, scoped, tag = 'scoped memory for tpu_custom_call.1']
    #allocation4 [shape = 's32[1]{0}', space=sflag, size = 0x4, scoped, tag = 'scoped memory for tpu_custom_call.1']
    #allocation5 [shape = 'u8[16384]{0}', space=vmem, size = 0x4000, scoped, tag = 'input window, operand 1, single buffered']
    #allocation6 [shape = 's32[1]{0}', space=sflag, size = 0x4, scoped, tag = 'scoped memory for tpu_custom_call.1']
    #allocation7 [shape = 'u8[16384]{0}', space=vmem, size = 0x4000, scoped, tag = 'input window, operand 2, single buffered']
    #allocation8 [shape = 'u8[262144]{0}', space=vmem, size = 0x40000, scoped, tag = 'input window, operand 3, single buffered']
    #allocation9 [shape = 's32[1]{0}', space=sflag, size = 0x4, scoped, tag = 'scoped memory for tpu_custom_call.1']
    #allocation10 [shape = 'u8[32768]{0}', space=vmem, size = 0x8000, scoped, tag = 'input window, operand 5, single buffered']
    #allocation11 [shape = 'u8[2048]{0}', space=vmem, size = 0x800, scoped, tag = 'output window, operand 0, single buffered']
    #allocation12 [shape = 'u8[2048]{0}', space=vmem, size = 0x800, scoped, tag = 'output window, operand 1, single buffered']
    #allocation13 [shape = 's32[1]{0}', space=sflag, size = 0x4, scoped, tag = 'scoped memory for tpu_custom_call.1']
    #allocation14 [shape = 'u8[2048]{0}', space=vmem, size = 0x800, scoped, tag = 'output window, operand 2, single buffered']
    %15 = vsyncpa [#allocation3], 0
    %16 = vsyncpa [#allocation6], 0
    %17 = vsyncpa [#allocation9], 0
    %18 = vsyncpa [#allocation4], 0
    %19 = vsyncpa [#allocation13], 0
    // Predicated region
    $region2: #{tpu_custom_call.1} parent=1 // pred_check
      _
    $region3: #{tpu_custom_call.1} parent=1 // pred_check_branch
      %21 = sbr.rel (0) target = $region5
    $region4: #{tpu_custom_call.1} parent=1 // pred_region
      %s23 = ssub.s32 512, 512
      %24 = vsyncadd [#allocation3], %s23
      %s26 = sshll.u32 [#allocation2], 4
      %s27 = int_to_ptr.vmem [resolvable:$true] %s26
      %29 = dma.hbm_to_vmem [thread:$0]  %s0, 512, %s27, [#allocation3]
    $region5: #{tpu_custom_call.1} parent=1 // pred_fallthru
      _
    // Predicated region
    $region6: #{tpu_custom_call.1} parent=1 // pred_check
      _
    $region7: #{tpu_custom_call.1} parent=1 // pred_check_branch
      %31 = sbr.rel (0) target = $region9
    $region8: #{tpu_custom_call.1} parent=1 // pred_region
      %s33 = ssub.s32 512, 512
      %34 = vsyncadd [#allocation6], %s33
      %s36 = sshll.u32 [#allocation5], 4
      %s37 = int_to_ptr.vmem [resolvable:$true] %s36
      %39 = dma.hbm_to_vmem [thread:$0]  %s1, 512, %s37, [#allocation6]
    $region9: #{tpu_custom_call.1} parent=1 // pred_fallthru
      _
    // Predicated region
    $region10: #{tpu_custom_call.1} parent=1 // pred_check
      _
    $region11: #{tpu_custom_call.1} parent=1 // pred_check_branch
      %41 = sbr.rel (0) target = $region13
    $region12: #{tpu_custom_call.1} parent=1 // pred_region
      %s43 = ssub.s32 512, 512
      %44 = vsyncadd [#allocation6], %s43
      %s46 = sshll.u32 [#allocation7], 4
      %s47 = int_to_ptr.vmem [resolvable:$true] %s46
      %49 = dma.hbm_to_vmem [thread:$0]  %s2, 512, %s47, [#allocation6]
    $region13: #{tpu_custom_call.1} parent=1 // pred_fallthru
      _
    // Predicated region
    $region14: #{tpu_custom_call.1} parent=1 // pred_check
      _
    $region15: #{tpu_custom_call.1} parent=1 // pred_check_branch
      %51 = sbr.rel (0) target = $region17
    $region16: #{tpu_custom_call.1} parent=1 // pred_region
      %s53 = ssub.s32 8192, 8192
      %54 = vsyncadd [#allocation9], %s53
      %s55 = sshll.u32 [#allocation8], 4
      %s56 = int_to_ptr.vmem [resolvable:$true] %s55
      %61 = dma.hbm_to_vmem [thread:$0]  %s3, 8192, %s56, [#allocation9], 64, 64, 4
    $region17: #{tpu_custom_call.1} parent=1 // pred_fallthru
      _
    // Predicated region
    $region18: #{tpu_custom_call.1} parent=1 // pred_check
      _
    $region19: #{tpu_custom_call.1} parent=1 // pred_check_branch
      %63 = sbr.rel (0) target = $region21
    $region20: #{tpu_custom_call.1} parent=1 // pred_region
      _
    $region21: #{tpu_custom_call.1} parent=1 // pred_fallthru
      _
    // Predicated region
    $region22: #{tpu_custom_call.1} parent=1 // pred_check
      _
    $region23: #{tpu_custom_call.1} parent=1 // pred_check_branch
      %65 = sbr.rel (0) target = $region25
    $region24: #{tpu_custom_call.1} parent=1 // pred_region
      %s67 = ssub.s32 1024, 1024
      %68 = vsyncadd [#allocation9], %s67
      %s69 = sshll.u32 [#allocation10], 4
      %s70 = int_to_ptr.vmem [resolvable:$true] %s69
      %75 = dma.hbm_to_vmem [thread:$0]  %s5, 1024, %s70, [#allocation9], 64, 64, 4
    $region25: #{tpu_custom_call.1} parent=1 // pred_fallthru
      _
    // Predicated region
    $region26: #{tpu_custom_call.1} parent=1 // pred_check
      _
    $region27: #{tpu_custom_call.1} parent=1 // pred_check_branch
      %77 = sbr.rel (0) target = $region29
    $region28: #{tpu_custom_call.1} parent=1 // pred_region
      _
    $region29: #{tpu_custom_call.1} parent=1 // pred_fallthru
      _
    // Predicated region
    $region30: #{tpu_custom_call.1} parent=1 // pred_check
      _
    $region31: #{tpu_custom_call.1} parent=1 // pred_check_branch
      %79 = sbr.rel (0) target = $region33
    $region32: #{tpu_custom_call.1} parent=1 // pred_region
      %80 = dma.done [#allocation3], 512
    $region33: #{tpu_custom_call.1} parent=1 // pred_fallthru
      _
    // Predicated region
    $region34: #{tpu_custom_call.1} parent=1 // pred_check
      _
    $region35: #{tpu_custom_call.1} parent=1 // pred_check_branch
      %82 = sbr.rel (0) target = $region37
    $region36: #{tpu_custom_call.1} parent=1 // pred_region
      %83 = dma.done [#allocation6], 512
    $region37: #{tpu_custom_call.1} parent=1 // pred_fallthru
      _
    // Predicated region
    $region38: #{tpu_custom_call.1} parent=1 // pred_check
      _
    $region39: #{tpu_custom_call.1} parent=1 // pred_check_branch
      %85 = sbr.rel (0) target = $region41
    $region40: #{tpu_custom_call.1} parent=1 // pred_region
      %86 = dma.done [#allocation6], 512
    $region41: #{tpu_custom_call.1} parent=1 // pred_fallthru
      _
    // Predicated region
    $region42: #{tpu_custom_call.1} parent=1 // pred_check
      _
    $region43: #{tpu_custom_call.1} parent=1 // pred_check_branch
      %88 = sbr.rel (0) target = $region45
    $region44: #{tpu_custom_call.1} parent=1 // pred_region
      %89 = dma.done [#allocation9], 8192
    $region45: #{tpu_custom_call.1} parent=1 // pred_fallthru
      _
    // Predicated region
    $region46: #{tpu_custom_call.1} parent=1 // pred_check
      _
    $region47: #{tpu_custom_call.1} parent=1 // pred_check_branch
      %91 = sbr.rel (0) target = $region49
    $region48: #{tpu_custom_call.1} parent=1 // pred_region
      %92 = dma.done [#allocation9], 1024
    $region49: #{tpu_custom_call.1} parent=1 // pred_fallthru
      _
    %v94 = vld [vmem:[#allocation8] sm:$0xf]
    %v95 = vld [vmem:[#allocation8 + $0x4] sm:$0xf]
    %v96 = vld [vmem:[#allocation8 + $0x8] sm:$0xf]
    %v97 = vld [vmem:[#allocation8 + $0xc] sm:$0xf]
    %v98 = vld [vmem:[#allocation8 + $0x10] sm:$0xf]
    %v99 = vld [vmem:[#allocation8 + $0x14] sm:$0xf]
    %v100 = vld [vmem:[#allocation8 + $0x18] sm:$0xf]
    %v101 = vld [vmem:[#allocation8 + $0x1c] sm:$0xf]
    %v102 = vld [vmem:[#allocation8 + $0x20] sm:$0xf]
    %v103 = vld [vmem:[#allocation8 + $0x24] sm:$0xf]
    %v104 = vld [vmem:[#allocation8 + $0x28] sm:$0xf]
    %v105 = vld [vmem:[#allocation8 + $0x2c] sm:$0xf]
    %v106 = vld [vmem:[#allocation8 + $0x30] sm:$0xf]
    %v107 = vld [vmem:[#allocation8 + $0x34] sm:$0xf]
    %v108 = vld [vmem:[#allocation8 + $0x38] sm:$0xf]
    %v109 = vld [vmem:[#allocation8 + $0x3c] sm:$0xf]
    %v110 = vld [vmem:[#allocation8 + $0x40] sm:$0xf]
    %v111 = vld [vmem:[#allocation8 + $0x44] sm:$0xf]
    %v112 = vld [vmem:[#allocation8 + $0x48] sm:$0xf]
    %v113 = vld [vmem:[#allocation8 + $0x4c] sm:$0xf]
    %v114 = vld [vmem:[#allocation8 + $0x50] sm:$0xf]
    %v115 = vld [vmem:[#allocation8 + $0x54] sm:$0xf]
    %v116 = vld [vmem:[#allocation8 + $0x58] sm:$0xf]
    %v117 = vld [vmem:[#allocation8 + $0x5c] sm:$0xf]
    %v118 = vld [vmem:[#allocation8 + $0x60] sm:$0xf]
    %v119 = vld [vmem:[#allocation8 + $0x64] sm:$0xf]
    %v120 = vld [vmem:[#allocation8 + $0x68] sm:$0xf]
    %v121 = vld [vmem:[#allocation8 + $0x6c] sm:$0xf]
    %v122 = vld [vmem:[#allocation8 + $0x70] sm:$0xf]
    %v123 = vld [vmem:[#allocation8 + $0x74] sm:$0xf]
    %v124 = vld [vmem:[#allocation8 + $0x78] sm:$0xf]
    %v125 = vld [vmem:[#allocation8 + $0x7c] sm:$0xf]
    %v126 = vld [vmem:[#allocation8 + $0x80] sm:$0xf]
    %v127 = vld [vmem:[#allocation8 + $0x84] sm:$0xf]
    %v128 = vld [vmem:[#allocation8 + $0x88] sm:$0xf]
    %v129 = vld [vmem:[#allocation8 + $0x8c] sm:$0xf]
    %v130 = vld [vmem:[#allocation8 + $0x90] sm:$0xf]
    %v131 = vld [vmem:[#allocation8 + $0x94] sm:$0xf]
    %v132 = vld [vmem:[#allocation8 + $0x98] sm:$0xf]
    %v133 = vld [vmem:[#allocation8 + $0x9c] sm:$0xf]
    %v134 = vld [vmem:[#allocation8 + $0xa0] sm:$0xf]
    %v135 = vld [vmem:[#allocation8 + $0xa4] sm:$0xf]
    %v136 = vld [vmem:[#allocation8 + $0xa8] sm:$0xf]
    %v137 = vld [vmem:[#allocation8 + $0xac] sm:$0xf]
    %v138 = vld [vmem:[#allocation8 + $0xb0] sm:$0xf]
    %v139 = vld [vmem:[#allocation8 + $0xb4] sm:$0xf]
    %v140 = vld [vmem:[#allocation8 + $0xb8] sm:$0xf]
    %v141 = vld [vmem:[#allocation8 + $0xbc] sm:$0xf]
    %v142 = vld [vmem:[#allocation8 + $0xc0] sm:$0xf]
    %v143 = vld [vmem:[#allocation8 + $0xc4] sm:$0xf]
    %v144 = vld [vmem:[#allocation8 + $0xc8] sm:$0xf]
    %v145 = vld [vmem:[#allocation8 + $0xcc] sm:$0xf]
    %v146 = vld [vmem:[#allocation8 + $0xd0] sm:$0xf]
    %v147 = vld [vmem:[#allocation8 + $0xd4] sm:$0xf]
    %v148 = vld [vmem:[#allocation8 + $0xd8] sm:$0xf]
    %v149 = vld [vmem:[#allocation8 + $0xdc] sm:$0xf]
    %v150 = vld [vmem:[#allocation8 + $0xe0] sm:$0xf]
    %v151 = vld [vmem:[#allocation8 + $0xe4] sm:$0xf]
    %v152 = vld [vmem:[#allocation8 + $0xe8] sm:$0xf]
    %v153 = vld [vmem:[#allocation8 + $0xec] sm:$0xf]
    %v154 = vld [vmem:[#allocation8 + $0xf0] sm:$0xf]
    %v155 = vld [vmem:[#allocation8 + $0xf4] sm:$0xf]
    %v156 = vld [vmem:[#allocation8 + $0xf8] sm:$0xf]
    %v157 = vld [vmem:[#allocation8 + $0xfc] sm:$0xf]
    %v158 = vld [vmem:[#allocation8 + $0x100] sm:$0xf]
    %v159 = vld [vmem:[#allocation8 + $0x104] sm:$0xf]
    %v160 = vld [vmem:[#allocation8 + $0x108] sm:$0xf]
    %v161 = vld [vmem:[#allocation8 + $0x10c] sm:$0xf]
    %v162 = vld [vmem:[#allocation8 + $0x110] sm:$0xf]
    %v163 = vld [vmem:[#allocation8 + $0x114] sm:$0xf]
    %v164 = vld [vmem:[#allocation8 + $0x118] sm:$0xf]
    %v165 = vld [vmem:[#allocation8 + $0x11c] sm:$0xf]
    %v166 = vld [vmem:[#allocation8 + $0x120] sm:$0xf]
    %v167 = vld [vmem:[#allocation8 + $0x124] sm:$0xf]
    %v168 = vld [vmem:[#allocation8 + $0x128] sm:$0xf]
    %v169 = vld [vmem:[#allocation8 + $0x12c] sm:$0xf]
    %v170 = vld [vmem:[#allocation8 + $0x130] sm:$0xf]
    %v171 = vld [vmem:[#allocation8 + $0x134] sm:$0xf]
    %v172 = vld [vmem:[#allocation8 + $0x138] sm:$0xf]
    %v173 = vld [vmem:[#allocation8 + $0x13c] sm:$0xf]
    %v174 = vld [vmem:[#allocation8 + $0x140] sm:$0xf]
    %v175 = vld [vmem:[#allocation8 + $0x144] sm:$0xf]
    %v176 = vld [vmem:[#allocation8 + $0x148] sm:$0xf]
    %v177 = vld [vmem:[#allocation8 + $0x14c] sm:$0xf]
    %v178 = vld [vmem:[#allocation8 + $0x150] sm:$0xf]
    %v179 = vld [vmem:[#allocation8 + $0x154] sm:$0xf]
    %v180 = vld [vmem:[#allocation8 + $0x158] sm:$0xf]
    %v181 = vld [vmem:[#allocation8 + $0x15c] sm:$0xf]
    %v182 = vld [vmem:[#allocation8 + $0x160] sm:$0xf]
    %v183 = vld [vmem:[#allocation8 + $0x164] sm:$0xf]
    %v184 = vld [vmem:[#allocation8 + $0x168] sm:$0xf]
    %v185 = vld [vmem:[#allocation8 + $0x16c] sm:$0xf]
    %v186 = vld [vmem:[#allocation8 + $0x170] sm:$0xf]
    %v187 = vld [vmem:[#allocation8 + $0x174] sm:$0xf]
    %v188 = vld [vmem:[#allocation8 + $0x178] sm:$0xf]
    %v189 = vld [vmem:[#allocation8 + $0x17c] sm:$0xf]
    %v190 = vld [vmem:[#allocation8 + $0x180] sm:$0xf]
    %v191 = vld [vmem:[#allocation8 + $0x184] sm:$0xf]
    %v192 = vld [vmem:[#allocation8 + $0x188] sm:$0xf]
    %v193 = vld [vmem:[#allocation8 + $0x18c] sm:$0xf]
    %v194 = vld [vmem:[#allocation8 + $0x190] sm:$0xf]
    %v195 = vld [vmem:[#allocation8 + $0x194] sm:$0xf]
    %v196 = vld [vmem:[#allocation8 + $0x198] sm:$0xf]
    %v197 = vld [vmem:[#allocation8 + $0x19c] sm:$0xf]
    %v198 = vld [vmem:[#allocation8 + $0x1a0] sm:$0xf]
    %v199 = vld [vmem:[#allocation8 + $0x1a4] sm:$0xf]
    %v200 = vld [vmem:[#allocation8 + $0x1a8] sm:$0xf]
    %v201 = vld [vmem:[#allocation8 + $0x1ac] sm:$0xf]
    %v202 = vld [vmem:[#allocation8 + $0x1b0] sm:$0xf]
    %v203 = vld [vmem:[#allocation8 + $0x1b4] sm:$0xf]
    %v204 = vld [vmem:[#allocation8 + $0x1b8] sm:$0xf]
    %v205 = vld [vmem:[#allocation8 + $0x1bc] sm:$0xf]
    %v206 = vld [vmem:[#allocation8 + $0x1c0] sm:$0xf]
    %v207 = vld [vmem:[#allocation8 + $0x1c4] sm:$0xf]
    %v208 = vld [vmem:[#allocation8 + $0x1c8] sm:$0xf]
    %v209 = vld [vmem:[#allocation8 + $0x1cc] sm:$0xf]
    %v210 = vld [vmem:[#allocation8 + $0x1d0] sm:$0xf]
    %v211 = vld [vmem:[#allocation8 + $0x1d4] sm:$0xf]
    %v212 = vld [vmem:[#allocation8 + $0x1d8] sm:$0xf]
    %v213 = vld [vmem:[#allocation8 + $0x1dc] sm:$0xf]
    %v214 = vld [vmem:[#allocation8 + $0x1e0] sm:$0xf]
    %v215 = vld [vmem:[#allocation8 + $0x1e4] sm:$0xf]
    %v216 = vld [vmem:[#allocation8 + $0x1e8] sm:$0xf]
    %v217 = vld [vmem:[#allocation8 + $0x1ec] sm:$0xf]
    %v218 = vld [vmem:[#allocation8 + $0x1f0] sm:$0xf]
    %v219 = vld [vmem:[#allocation8 + $0x1f4] sm:$0xf]
    %v220 = vld [vmem:[#allocation8 + $0x1f8] sm:$0xf]
    %v221 = vld [vmem:[#allocation8 + $0x1fc] sm:$0xf]
    %v222 = vld [vmem:[%s4] sm:$0x1]
    %v223 = vld [vmem:[#allocation10] sm:$0xf]
    %v224 = vld [vmem:[#allocation10 + $0x4] sm:$0xf]
    %v225 = vld [vmem:[#allocation10 + $0x8] sm:$0xf]
    %v226 = vld [vmem:[#allocation10 + $0xc] sm:$0xf]
    %v227 = vld [vmem:[#allocation10 + $0x10] sm:$0xf]
    %v228 = vld [vmem:[#allocation10 + $0x14] sm:$0xf]
    %v229 = vld [vmem:[#allocation10 + $0x18] sm:$0xf]
    %v230 = vld [vmem:[#allocation10 + $0x1c] sm:$0xf]
    %v231 = vld [vmem:[#allocation10 + $0x20] sm:$0xf]
    %v232 = vld [vmem:[#allocation10 + $0x24] sm:$0xf]
    %v233 = vld [vmem:[#allocation10 + $0x28] sm:$0xf]
    %v234 = vld [vmem:[#allocation10 + $0x2c] sm:$0xf]
    %v235 = vld [vmem:[#allocation10 + $0x30] sm:$0xf]
    %v236 = vld [vmem:[#allocation10 + $0x34] sm:$0xf]
    %v237 = vld [vmem:[#allocation10 + $0x38] sm:$0xf]
    %v238 = vld [vmem:[#allocation10 + $0x3c] sm:$0xf]
    %v239 = vld [vmem:[%s6] sm:$0x1]
    %v240 = vld [vmem:[#allocation2] sm:$0xff]
    %v241 = vld [vmem:[#allocation2 + $0x8] sm:$0xff]
    %v242 = vld [vmem:[#allocation2 + $0x10] sm:$0xff]
    %v243 = vld [vmem:[#allocation2 + $0x18] sm:$0xff]
    %v245 = vlaneseq
    %v246 = vshrl.u32 %v245, 7
    %v247 = vsub.s32 0, %v246
    %v248 = vrot.slane %v222, %v247
    %v254 = vunpack.c.l.b16 %v240
    %v255 = vunpack.c.h.b16 %v240
    %v256 = vunpack.c.l.b16 %v241
    %v257 = vunpack.c.h.b16 %v241
    %v258 = vunpack.c.l.b16 %v242
    %v259 = vunpack.c.h.b16 %v242
    %v260 = vunpack.c.l.b16 %v243
    %v261 = vunpack.c.h.b16 %v243
    %v262 = vpack.c.b16 %v254, %v254
    %v263 = vpack.c.b16 %v255, %v255
    %v264 = vpack.c.b16 %v256, %v256
    %v265 = vpack.c.b16 %v257, %v257
    %v266 = vpack.c.b16 %v258, %v258
    %v267 = vpack.c.b16 %v259, %v259
    %v268 = vpack.c.b16 %v260, %v260
    %v269 = vpack.c.b16 %v261, %v261
    %v406 = vunpack.c.l.b16 %v94
    %v407 = vunpack.c.l.b16 %v95
    %v408 = vunpack.c.l.b16 %v96
    %v409 = vunpack.c.l.b16 %v97
    %v410 = vunpack.c.l.b16 %v98
    %v411 = vunpack.c.l.b16 %v99
    %v412 = vunpack.c.l.b16 %v100
    %v413 = vunpack.c.l.b16 %v101
    %v414 = vunpack.c.l.b16 %v102
    %v415 = vunpack.c.l.b16 %v103
    %v416 = vunpack.c.l.b16 %v104
    %v417 = vunpack.c.l.b16 %v105
    %v418 = vunpack.c.l.b16 %v106
    %v419 = vunpack.c.l.b16 %v107
    %v420 = vunpack.c.l.b16 %v108
    %v421 = vunpack.c.l.b16 %v109
    %v422 = vunpack.c.l.b16 %v110
    %v423 = vunpack.c.l.b16 %v111
    %v424 = vunpack.c.l.b16 %v112
    %v425 = vunpack.c.l.b16 %v113
    %v426 = vunpack.c.l.b16 %v114
    %v427 = vunpack.c.l.b16 %v115
    %v428 = vunpack.c.l.b16 %v116
    %v429 = vunpack.c.l.b16 %v117
    %v430 = vunpack.c.l.b16 %v118
    %v431 = vunpack.c.l.b16 %v119
    %v432 = vunpack.c.l.b16 %v120
    %v433 = vunpack.c.l.b16 %v121
    %v434 = vunpack.c.l.b16 %v122
    %v435 = vunpack.c.l.b16 %v123
    %v436 = vunpack.c.l.b16 %v124
    %v437 = vunpack.c.l.b16 %v125
    %v438 = vunpack.c.l.b16 %v126
    %v439 = vunpack.c.l.b16 %v127
    %v440 = vunpack.c.l.b16 %v128
    %v441 = vunpack.c.l.b16 %v129
    %v442 = vunpack.c.l.b16 %v130
    %v443 = vunpack.c.l.b16 %v131
    %v444 = vunpack.c.l.b16 %v132
    %v445 = vunpack.c.l.b16 %v133
    %v446 = vunpack.c.l.b16 %v134
    %v447 = vunpack.c.l.b16 %v135
    %v448 = vunpack.c.l.b16 %v136
    %v449 = vunpack.c.l.b16 %v137
    %v450 = vunpack.c.l.b16 %v138
    %v451 = vunpack.c.l.b16 %v139
    %v452 = vunpack.c.l.b16 %v140
    %v453 = vunpack.c.l.b16 %v141
    %v454 = vunpack.c.l.b16 %v142
    %v455 = vunpack.c.l.b16 %v143
    %v456 = vunpack.c.l.b16 %v144
    %v457 = vunpack.c.l.b16 %v145
    %v458 = vunpack.c.l.b16 %v146
    %v459 = vunpack.c.l.b16 %v147
    %v460 = vunpack.c.l.b16 %v148
    %v461 = vunpack.c.l.b16 %v149
    %v462 = vunpack.c.l.b16 %v150
    %v463 = vunpack.c.l.b16 %v151
    %v464 = vunpack.c.l.b16 %v152
    %v465 = vunpack.c.l.b16 %v153
    %v466 = vunpack.c.l.b16 %v154
    %v467 = vunpack.c.l.b16 %v155
    %v468 = vunpack.c.l.b16 %v156
    %v469 = vunpack.c.l.b16 %v157
    %v470 = vunpack.c.l.b16 %v158
    %v471 = vunpack.c.l.b16 %v159
    %v472 = vunpack.c.l.b16 %v160
    %v473 = vunpack.c.l.b16 %v161
    %v474 = vunpack.c.l.b16 %v162
    %v475 = vunpack.c.l.b16 %v163
    %v476 = vunpack.c.l.b16 %v164
    %v477 = vunpack.c.l.b16 %v165
    %v478 = vunpack.c.l.b16 %v166
    %v479 = vunpack.c.l.b16 %v167
    %v480 = vunpack.c.l.b16 %v168
    %v481 = vunpack.c.l.b16 %v169
    %v482 = vunpack.c.l.b16 %v170
    %v483 = vunpack.c.l.b16 %v171
    %v484 = vunpack.c.l.b16 %v172
    %v485 = vunpack.c.l.b16 %v173
    %v486 = vunpack.c.l.b16 %v174
    %v487 = vunpack.c.l.b16 %v175
    %v488 = vunpack.c.l.b16 %v176
    %v489 = vunpack.c.l.b16 %v177
    %v490 = vunpack.c.l.b16 %v178
    %v491 = vunpack.c.l.b16 %v179
    %v492 = vunpack.c.l.b16 %v180
    %v493 = vunpack.c.l.b16 %v181
    %v494 = vunpack.c.l.b16 %v182
    %v495 = vunpack.c.l.b16 %v183
    %v496 = vunpack.c.l.b16 %v184
    %v497 = vunpack.c.l.b16 %v185
    %v498 = vunpack.c.l.b16 %v186
    %v499 = vunpack.c.l.b16 %v187
    %v500 = vunpack.c.l.b16 %v188
    %v501 = vunpack.c.l.b16 %v189
    %v502 = vunpack.c.l.b16 %v190
    %v503 = vunpack.c.l.b16 %v191
    %v504 = vunpack.c.l.b16 %v192
    %v505 = vunpack.c.l.b16 %v193
    %v506 = vunpack.c.l.b16 %v194
    %v507 = vunpack.c.l.b16 %v195
    %v508 = vunpack.c.l.b16 %v196
    %v509 = vunpack.c.l.b16 %v197
    %v510 = vunpack.c.l.b16 %v198
    %v511 = vunpack.c.l.b16 %v199
    %v512 = vunpack.c.l.b16 %v200
    %v513 = vunpack.c.l.b16 %v201
    %v514 = vunpack.c.l.b16 %v202
    %v515 = vunpack.c.l.b16 %v203
    %v516 = vunpack.c.l.b16 %v204
    %v517 = vunpack.c.l.b16 %v205
    %v518 = vunpack.c.l.b16 %v206
    %v519 = vunpack.c.l.b16 %v207
    %v520 = vunpack.c.l.b16 %v208
    %v521 = vunpack.c.l.b16 %v209
    %v522 = vunpack.c.l.b16 %v210
    %v523 = vunpack.c.l.b16 %v211
    %v524 = vunpack.c.l.b16 %v212
    %v525 = vunpack.c.l.b16 %v213
    %v526 = vunpack.c.l.b16 %v214
    %v527 = vunpack.c.l.b16 %v215
    %v528 = vunpack.c.l.b16 %v216
    %v529 = vunpack.c.l.b16 %v217
    %v530 = vunpack.c.l.b16 %v218
    %v531 = vunpack.c.l.b16 %v219
    %v532 = vunpack.c.l.b16 %v220
    %v533 = vunpack.c.l.b16 %v221
    %v534 = vpack.c.b16 %v407, %v406
    %v535 = vpack.c.b16 %v409, %v408
    %v536 = vpack.c.b16 %v411, %v410
    %v537 = vpack.c.b16 %v413, %v412
    %v538 = vpack.c.b16 %v415, %v414
    %v539 = vpack.c.b16 %v417, %v416
    %v540 = vpack.c.b16 %v419, %v418
    %v541 = vpack.c.b16 %v421, %v420
    %v542 = vpack.c.b16 %v423, %v422
    %v543 = vpack.c.b16 %v425, %v424
    %v544 = vpack.c.b16 %v427, %v426
    %v545 = vpack.c.b16 %v429, %v428
    %v546 = vpack.c.b16 %v431, %v430
    %v547 = vpack.c.b16 %v433, %v432
    %v548 = vpack.c.b16 %v435, %v434
    %v549 = vpack.c.b16 %v437, %v436
    %v550 = vpack.c.b16 %v439, %v438
    %v551 = vpack.c.b16 %v441, %v440
    %v552 = vpack.c.b16 %v443, %v442
    %v553 = vpack.c.b16 %v445, %v444
    %v554 = vpack.c.b16 %v447, %v446
    %v555 = vpack.c.b16 %v449, %v448
    %v556 = vpack.c.b16 %v451, %v450
    %v557 = vpack.c.b16 %v453, %v452
    %v558 = vpack.c.b16 %v455, %v454
    %v559 = vpack.c.b16 %v457, %v456
    %v560 = vpack.c.b16 %v459, %v458
    %v561 = vpack.c.b16 %v461, %v460
    %v562 = vpack.c.b16 %v463, %v462
    %v563 = vpack.c.b16 %v465, %v464
    %v564 = vpack.c.b16 %v467, %v466
    %v565 = vpack.c.b16 %v469, %v468
    %v566 = vpack.c.b16 %v471, %v470
    %v567 = vpack.c.b16 %v473, %v472
    %v568 = vpack.c.b16 %v475, %v474
    %v569 = vpack.c.b16 %v477, %v476
    %v570 = vpack.c.b16 %v479, %v478
    %v571 = vpack.c.b16 %v481, %v480
    %v572 = vpack.c.b16 %v483, %v482
    %v573 = vpack.c.b16 %v485, %v484
    %v574 = vpack.c.b16 %v487, %v486
    %v575 = vpack.c.b16 %v489, %v488
    %v576 = vpack.c.b16 %v491, %v490
    %v577 = vpack.c.b16 %v493, %v492
    %v578 = vpack.c.b16 %v495, %v494
    %v579 = vpack.c.b16 %v497, %v496
    %v580 = vpack.c.b16 %v499, %v498
    %v581 = vpack.c.b16 %v501, %v500
    %v582 = vpack.c.b16 %v503, %v502
    %v583 = vpack.c.b16 %v505, %v504
    %v584 = vpack.c.b16 %v507, %v506
    %v585 = vpack.c.b16 %v509, %v508
    %v586 = vpack.c.b16 %v511, %v510
    %v587 = vpack.c.b16 %v513, %v512
    %v588 = vpack.c.b16 %v515, %v514
    %v589 = vpack.c.b16 %v517, %v516
    %v590 = vpack.c.b16 %v519, %v518
    %v591 = vpack.c.b16 %v521, %v520
    %v592 = vpack.c.b16 %v523, %v522
    %v593 = vpack.c.b16 %v525, %v524
    %v594 = vpack.c.b16 %v527, %v526
    %v595 = vpack.c.b16 %v529, %v528
    %v596 = vpack.c.b16 %v531, %v530
    %v597 = vpack.c.b16 %v533, %v532
    %662 = vmatprep.subr.bf16.mxu0 0
    %663 = vmatpush1.bf16.msra.mxu0 %v541
    %664 = vmatprep.subr.bf16.mxu0 0
    %665 = vmatpush1.bf16.msra.mxu0 %v540
    %666 = vmatprep.subr.bf16.mxu0 0
    %667 = vmatpush1.bf16.msra.mxu0 %v539
    %668 = vmatprep.subr.bf16.mxu0 0
    %669 = vmatpush1.bf16.msra.mxu0 %v538
    %670 = vmatprep.subr.bf16.mxu0 0
    %671 = vmatpush1.bf16.msra.mxu0 %v537
    %672 = vmatprep.subr.bf16.mxu0 0
    %673 = vmatpush1.bf16.msra.mxu0 %v536
    %674 = vmatprep.subr.bf16.mxu0 0
    %675 = vmatpush1.bf16.msra.mxu0 %v535
    %676 = vmatprep.subr.bf16.mxu0 0
    %677 = vmatpush1.bf16.msra.mxu0 %v534
    %678 = vmatprep.subr.bf16.mxu0 0
    %679 = vmatpush2.bf16.msra.mxu0 %v549
    %680 = vmatprep.subr.bf16.mxu0 0
    %681 = vmatpush2.bf16.msra.mxu0 %v548
    %682 = vmatprep.subr.bf16.mxu0 0
    %683 = vmatpush2.bf16.msra.mxu0 %v547
    %684 = vmatprep.subr.bf16.mxu0 0
    %685 = vmatpush2.bf16.msra.mxu0 %v546
    %686 = vmatprep.subr.bf16.mxu0 0
    %687 = vmatpush2.bf16.msra.mxu0 %v545
    %688 = vmatprep.subr.bf16.mxu0 0
    %689 = vmatpush2.bf16.msra.mxu0 %v544
    %690 = vmatprep.subr.bf16.mxu0 0
    %691 = vmatpush2.bf16.msra.mxu0 %v543
    %692 = vmatprep.subr.bf16.mxu0 0
    %693 = vmatpush2.bf16.msra.mxu0 %v542
    %694 = vmatprep.mubr.bf16.mxu0 %v263
    %695 = vmatmul.mubr.bf16.gmra.mxu0 %v262
    %v696 = vpop.f32.mrf.mxu0
    %v697 = vadd.f32 %v248, %v696
    %v698 = vpop.f32.mrf.mxu0
    %v699 = vpop.f32.mrf.mxu0
    %v700 = vpop.f32.mrf.mxu0
    %701 = vdwg.mxu0
    %702 = vmatprep.subr.bf16.mxu0 0
    %703 = vmatpush1.bf16.msra.mxu0 %v557
    %704 = vmatprep.subr.bf16.mxu0 0
    %705 = vmatpush1.bf16.msra.mxu0 %v556
    %706 = vmatprep.subr.bf16.mxu0 0
    %707 = vmatpush1.bf16.msra.mxu0 %v555
    %708 = vmatprep.subr.bf16.mxu0 0
    %709 = vmatpush1.bf16.msra.mxu0 %v554
    %710 = vmatprep.subr.bf16.mxu0 0
    %711 = vmatpush1.bf16.msra.mxu0 %v553
    %712 = vmatprep.subr.bf16.mxu0 0
    %713 = vmatpush1.bf16.msra.mxu0 %v552
    %714 = vmatprep.subr.bf16.mxu0 0
    %715 = vmatpush1.bf16.msra.mxu0 %v551
    %716 = vmatprep.subr.bf16.mxu0 0
    %717 = vmatpush1.bf16.msra.mxu0 %v550
    %718 = vmatprep.subr.bf16.mxu0 0
    %719 = vmatpush2.bf16.msra.mxu0 %v565
    %720 = vmatprep.subr.bf16.mxu0 0
    %721 = vmatpush2.bf16.msra.mxu0 %v564
    %722 = vmatprep.subr.bf16.mxu0 0
    %723 = vmatpush2.bf16.msra.mxu0 %v563
    %724 = vmatprep.subr.bf16.mxu0 0
    %725 = vmatpush2.bf16.msra.mxu0 %v562
    %726 = vmatprep.subr.bf16.mxu0 0
    %727 = vmatpush2.bf16.msra.mxu0 %v561
    %728 = vmatprep.subr.bf16.mxu0 0
    %729 = vmatpush2.bf16.msra.mxu0 %v560
    %730 = vmatprep.subr.bf16.mxu0 0
    %731 = vmatpush2.bf16.msra.mxu0 %v559
    %732 = vmatprep.subr.bf16.mxu0 0
    %733 = vmatpush2.bf16.msra.mxu0 %v558
    %734 = vmatprep.mubr.bf16.mxu0 %v265
    %735 = vmatmul.mubr.bf16.gmra.mxu0 %v264
    %v736 = vpop.f32.mrf.mxu0
    %v737 = vadd.f32 %v697, %v736
    %v738 = vpop.f32.mrf.mxu0
    %v739 = vpop.f32.mrf.mxu0
    %v740 = vpop.f32.mrf.mxu0
    %741 = vdwg.mxu0
    %742 = vmatprep.subr.bf16.mxu0 0
    %743 = vmatpush1.bf16.msra.mxu0 %v573
    %744 = vmatprep.subr.bf16.mxu0 0
    %745 = vmatpush1.bf16.msra.mxu0 %v572
    %746 = vmatprep.subr.bf16.mxu0 0
    %747 = vmatpush1.bf16.msra.mxu0 %v571
    %748 = vmatprep.subr.bf16.mxu0 0
    %749 = vmatpush1.bf16.msra.mxu0 %v570
    %750 = vmatprep.subr.bf16.mxu0 0
    %751 = vmatpush1.bf16.msra.mxu0 %v569
    %752 = vmatprep.subr.bf16.mxu0 0
    %753 = vmatpush1.bf16.msra.mxu0 %v568
    %754 = vmatprep.subr.bf16.mxu0 0
    %755 = vmatpush1.bf16.msra.mxu0 %v567
    %756 = vmatprep.subr.bf16.mxu0 0
    %757 = vmatpush1.bf16.msra.mxu0 %v566
    %758 = vmatprep.subr.bf16.mxu0 0
    %759 = vmatpush2.bf16.msra.mxu0 %v581
    %760 = vmatprep.subr.bf16.mxu0 0
    %761 = vmatpush2.bf16.msra.mxu0 %v580
    %762 = vmatprep.subr.bf16.mxu0 0
    %763 = vmatpush2.bf16.msra.mxu0 %v579
    %764 = vmatprep.subr.bf16.mxu0 0
    %765 = vmatpush2.bf16.msra.mxu0 %v578
    %766 = vmatprep.subr.bf16.mxu0 0
    %767 = vmatpush2.bf16.msra.mxu0 %v577
    %768 = vmatprep.subr.bf16.mxu0 0
    %769 = vmatpush2.bf16.msra.mxu0 %v576
    %770 = vmatprep.subr.bf16.mxu0 0
    %771 = vmatpush2.bf16.msra.mxu0 %v575
    %772 = vmatprep.subr.bf16.mxu0 0
    %773 = vmatpush2.bf16.msra.mxu0 %v574
    %774 = vmatprep.mubr.bf16.mxu0 %v267
    %775 = vmatmul.mubr.bf16.gmra.mxu0 %v266
    %v776 = vpop.f32.mrf.mxu0
    %v777 = vadd.f32 %v737, %v776
    %v778 = vpop.f32.mrf.mxu0
    %v779 = vpop.f32.mrf.mxu0
    %v780 = vpop.f32.mrf.mxu0
    %781 = vdwg.mxu0
    %782 = vmatprep.subr.bf16.mxu0 0
    %783 = vmatpush1.bf16.msra.mxu0 %v589
    %784 = vmatprep.subr.bf16.mxu0 0
    %785 = vmatpush1.bf16.msra.mxu0 %v588
    %786 = vmatprep.subr.bf16.mxu0 0
    %787 = vmatpush1.bf16.msra.mxu0 %v587
    %788 = vmatprep.subr.bf16.mxu0 0
    %789 = vmatpush1.bf16.msra.mxu0 %v586
    %790 = vmatprep.subr.bf16.mxu0 0
    %791 = vmatpush1.bf16.msra.mxu0 %v585
    %792 = vmatprep.subr.bf16.mxu0 0
    %793 = vmatpush1.bf16.msra.mxu0 %v584
    %794 = vmatprep.subr.bf16.mxu0 0
    %795 = vmatpush1.bf16.msra.mxu0 %v583
    %796 = vmatprep.subr.bf16.mxu0 0
    %797 = vmatpush1.bf16.msra.mxu0 %v582
    %798 = vmatprep.subr.bf16.mxu0 0
    %799 = vmatpush2.bf16.msra.mxu0 %v597
    %800 = vmatprep.subr.bf16.mxu0 0
    %801 = vmatpush2.bf16.msra.mxu0 %v596
    %802 = vmatprep.subr.bf16.mxu0 0
    %803 = vmatpush2.bf16.msra.mxu0 %v595
    %804 = vmatprep.subr.bf16.mxu0 0
    %805 = vmatpush2.bf16.msra.mxu0 %v594
    %806 = vmatprep.subr.bf16.mxu0 0
    %807 = vmatpush2.bf16.msra.mxu0 %v593
    %808 = vmatprep.subr.bf16.mxu0 0
    %809 = vmatpush2.bf16.msra.mxu0 %v592
    %810 = vmatprep.subr.bf16.mxu0 0
    %811 = vmatpush2.bf16.msra.mxu0 %v591
    %812 = vmatprep.subr.bf16.mxu0 0
    %813 = vmatpush2.bf16.msra.mxu0 %v590
    %814 = vmatprep.mubr.bf16.mxu0 %v269
    %815 = vmatmul.mubr.bf16.gmra.mxu0 %v268
    %v816 = vpop.f32.mrf.mxu0
    %v817 = vadd.f32 %v777, %v816
    %v818 = vpop.f32.mrf.mxu0
    %v819 = vpop.f32.mrf.mxu0
    %v820 = vpop.f32.mrf.mxu0
    %821 = vdwg.mxu0
    %v822 = vmax.f32 %v817, 0.0
    %v823 = vpack.c.bf16 %v822, %v822
    %v825 = vlaneseq
    %v826 = vshrl.u32 %v825, 7
    %v827 = vsub.s32 0, %v826
    %v828 = vrot.slane %v239, %v827
    %v846 = vunpack.c.l.b16 %v223
    %v847 = vunpack.c.l.b16 %v224
    %v848 = vunpack.c.l.b16 %v225
    %v849 = vunpack.c.l.b16 %v226
    %v850 = vunpack.c.l.b16 %v227
    %v851 = vunpack.c.l.b16 %v228
    %v852 = vunpack.c.l.b16 %v229
    %v853 = vunpack.c.l.b16 %v230
    %v854 = vunpack.c.l.b16 %v231
    %v855 = vunpack.c.l.b16 %v232
    %v856 = vunpack.c.l.b16 %v233
    %v857 = vunpack.c.l.b16 %v234
    %v858 = vunpack.c.l.b16 %v235
    %v859 = vunpack.c.l.b16 %v236
    %v860 = vunpack.c.l.b16 %v237
    %v861 = vunpack.c.l.b16 %v238
    %v862 = vpack.c.b16 %v847, %v846
    %v863 = vpack.c.b16 %v849, %v848
    %v864 = vpack.c.b16 %v851, %v850
    %v865 = vpack.c.b16 %v853, %v852
    %v866 = vpack.c.b16 %v855, %v854
    %v867 = vpack.c.b16 %v857, %v856
    %v868 = vpack.c.b16 %v859, %v858
    %v869 = vpack.c.b16 %v861, %v860
    %878 = vmatprep.subr.bf16.mxu0 0
    %879 = vmatpush1.bf16.msra.mxu0 %v869
    %880 = vmatprep.subr.bf16.mxu0 0
    %881 = vmatpush1.bf16.msra.mxu0 %v868
    %882 = vmatprep.subr.bf16.mxu0 0
    %883 = vmatpush1.bf16.msra.mxu0 %v867
    %884 = vmatprep.subr.bf16.mxu0 0
    %885 = vmatpush1.bf16.msra.mxu0 %v866
    %886 = vmatprep.subr.bf16.mxu0 0
    %887 = vmatpush1.bf16.msra.mxu0 %v865
    %888 = vmatprep.subr.bf16.mxu0 0
    %889 = vmatpush1.bf16.msra.mxu0 %v864
    %890 = vmatprep.subr.bf16.mxu0 0
    %891 = vmatpush1.bf16.msra.mxu0 %v863
    %892 = vmatprep.subr.bf16.mxu0 0
    %893 = vmatpush1.bf16.msra.mxu0 %v862
    %894 = vmatprep.subr.bf16.mxu0 0
    %895 = vmatpush2.bf16.msra.mxu0 0
    %896 = vmatprep.subr.bf16.mxu0 0
    %897 = vmatpush2.bf16.msra.mxu0 0
    %898 = vmatprep.subr.bf16.mxu0 0
    %899 = vmatpush2.bf16.msra.mxu0 0
    %900 = vmatprep.subr.bf16.mxu0 0
    %901 = vmatpush2.bf16.msra.mxu0 0
    %902 = vmatprep.subr.bf16.mxu0 0
    %903 = vmatpush2.bf16.msra.mxu0 0
    %904 = vmatprep.subr.bf16.mxu0 0
    %905 = vmatpush2.bf16.msra.mxu0 0
    %906 = vmatprep.subr.bf16.mxu0 0
    %907 = vmatpush2.bf16.msra.mxu0 0
    %908 = vmatprep.subr.bf16.mxu0 0
    %909 = vmatpush2.bf16.msra.mxu0 0
    %910 = vmatprep.mubr.bf16.mxu0 0
    %911 = vmatmul.mubr.bf16.gmra.mxu0 %v823
    %v912 = vpop.f32.mrf.mxu0
    %v913 = vadd.f32 %v828, %v912
    %v914 = vpop.f32.mrf.mxu0
    %v915 = vpop.f32.mrf.mxu0
    %v916 = vpop.f32.mrf.mxu0
    %917 = vdwg.mxu0
    %v918 = vpack.c.bf16 %v913, %v913
    %919 = vst [vmem:[#allocation11] sm:$0xf] %v918
    %v920 = vld [vmem:[#allocation5] sm:$0xff]
    %v921 = vld [vmem:[#allocation5 + $0x8] sm:$0xff]
    %v922 = vld [vmem:[#allocation5 + $0x10] sm:$0xff]
    %v923 = vld [vmem:[#allocation5 + $0x18] sm:$0xff]
    %v928 = vunpack.c.l.b16 %v920
    %v929 = vunpack.c.h.b16 %v920
    %v930 = vunpack.c.l.b16 %v921
    %v931 = vunpack.c.h.b16 %v921
    %v932 = vunpack.c.l.b16 %v922
    %v933 = vunpack.c.h.b16 %v922
    %v934 = vunpack.c.l.b16 %v923
    %v935 = vunpack.c.h.b16 %v923
    %v936 = vpack.c.b16 %v928, %v928
    %v937 = vpack.c.b16 %v929, %v929
    %v938 = vpack.c.b16 %v930, %v930
    %v939 = vpack.c.b16 %v931, %v931
    %v940 = vpack.c.b16 %v932, %v932
    %v941 = vpack.c.b16 %v933, %v933
    %v942 = vpack.c.b16 %v934, %v934
    %v943 = vpack.c.b16 %v935, %v935
    %952 = vmatprep.subr.bf16.mxu0 0
    %953 = vmatpush1.bf16.msra.mxu0 %v541
    %954 = vmatprep.subr.bf16.mxu0 0
    %955 = vmatpush1.bf16.msra.mxu0 %v540
    %956 = vmatprep.subr.bf16.mxu0 0
    %957 = vmatpush1.bf16.msra.mxu0 %v539
    %958 = vmatprep.subr.bf16.mxu0 0
    %959 = vmatpush1.bf16.msra.mxu0 %v538
    %960 = vmatprep.subr.bf16.mxu0 0
    %961 = vmatpush1.bf16.msra.mxu0 %v537
    %962 = vmatprep.subr.bf16.mxu0 0
    %963 = vmatpush1.bf16.msra.mxu0 %v536
    %964 = vmatprep.subr.bf16.mxu0 0
    %965 = vmatpush1.bf16.msra.mxu0 %v535
    %966 = vmatprep.subr.bf16.mxu0 0
    %967 = vmatpush1.bf16.msra.mxu0 %v534
    %968 = vmatprep.subr.bf16.mxu0 0
    %969 = vmatpush2.bf16.msra.mxu0 %v549
    %970 = vmatprep.subr.bf16.mxu0 0
    %971 = vmatpush2.bf16.msra.mxu0 %v548
    %972 = vmatprep.subr.bf16.mxu0 0
    %973 = vmatpush2.bf16.msra.mxu0 %v547
    %974 = vmatprep.subr.bf16.mxu0 0
    %975 = vmatpush2.bf16.msra.mxu0 %v546
    %976 = vmatprep.subr.bf16.mxu0 0
    %977 = vmatpush2.bf16.msra.mxu0 %v545
    %978 = vmatprep.subr.bf16.mxu0 0
    %979 = vmatpush2.bf16.msra.mxu0 %v544
    %980 = vmatprep.subr.bf16.mxu0 0
    %981 = vmatpush2.bf16.msra.mxu0 %v543
    %982 = vmatprep.subr.bf16.mxu0 0
    %983 = vmatpush2.bf16.msra.mxu0 %v542
    %984 = vmatprep.mubr.bf16.mxu0 %v937
    %985 = vmatmul.mubr.bf16.gmra.mxu0 %v936
    %v986 = vpop.f32.mrf.mxu0
    %v987 = vadd.f32 %v248, %v986
    %v988 = vpop.f32.mrf.mxu0
    %v989 = vpop.f32.mrf.mxu0
    %v990 = vpop.f32.mrf.mxu0
    %991 = vdwg.mxu0
    %992 = vmatprep.subr.bf16.mxu0 0
    %993 = vmatpush1.bf16.msra.mxu0 %v557
    %994 = vmatprep.subr.bf16.mxu0 0
    %995 = vmatpush1.bf16.msra.mxu0 %v556
    %996 = vmatprep.subr.bf16.mxu0 0
    %997 = vmatpush1.bf16.msra.mxu0 %v555
    %998 = vmatprep.subr.bf16.mxu0 0
    %999 = vmatpush1.bf16.msra.mxu0 %v554
    %1000 = vmatprep.subr.bf16.mxu0 0
    %1001 = vmatpush1.bf16.msra.mxu0 %v553
    %1002 = vmatprep.subr.bf16.mxu0 0
    %1003 = vmatpush1.bf16.msra.mxu0 %v552
    %1004 = vmatprep.subr.bf16.mxu0 0
    %1005 = vmatpush1.bf16.msra.mxu0 %v551
    %1006 = vmatprep.subr.bf16.mxu0 0
    %1007 = vmatpush1.bf16.msra.mxu0 %v550
    %1008 = vmatprep.subr.bf16.mxu0 0
    %1009 = vmatpush2.bf16.msra.mxu0 %v565
    %1010 = vmatprep.subr.bf16.mxu0 0
    %1011 = vmatpush2.bf16.msra.mxu0 %v564
    %1012 = vmatprep.subr.bf16.mxu0 0
    %1013 = vmatpush2.bf16.msra.mxu0 %v563
    %1014 = vmatprep.subr.bf16.mxu0 0
    %1015 = vmatpush2.bf16.msra.mxu0 %v562
    %1016 = vmatprep.subr.bf16.mxu0 0
    %1017 = vmatpush2.bf16.msra.mxu0 %v561
    %1018 = vmatprep.subr.bf16.mxu0 0
    %1019 = vmatpush2.bf16.msra.mxu0 %v560
    %1020 = vmatprep.subr.bf16.mxu0 0
    %1021 = vmatpush2.bf16.msra.mxu0 %v559
    %1022 = vmatprep.subr.bf16.mxu0 0
    %1023 = vmatpush2.bf16.msra.mxu0 %v558
    %1024 = vmatprep.mubr.bf16.mxu0 %v939
    %1025 = vmatmul.mubr.bf16.gmra.mxu0 %v938
    %v1026 = vpop.f32.mrf.mxu0
    %v1027 = vadd.f32 %v987, %v1026
    %v1028 = vpop.f32.mrf.mxu0
    %v1029 = vpop.f32.mrf.mxu0
    %v1030 = vpop.f32.mrf.mxu0
    %1031 = vdwg.mxu0
    %1032 = vmatprep.subr.bf16.mxu0 0
    %1033 = vmatpush1.bf16.msra.mxu0 %v573
    %1034 = vmatprep.subr.bf16.mxu0 0
    %1035 = vmatpush1.bf16.msra.mxu0 %v572
    %1036 = vmatprep.subr.bf16.mxu0 0
    %1037 = vmatpush1.bf16.msra.mxu0 %v571
    %1038 = vmatprep.subr.bf16.mxu0 0
    %1039 = vmatpush1.bf16.msra.mxu0 %v570
    %1040 = vmatprep.subr.bf16.mxu0 0
    %1041 = vmatpush1.bf16.msra.mxu0 %v569
    %1042 = vmatprep.subr.bf16.mxu0 0
    %1043 = vmatpush1.bf16.msra.mxu0 %v568
    %1044 = vmatprep.subr.bf16.mxu0 0
    %1045 = vmatpush1.bf16.msra.mxu0 %v567
    %1046 = vmatprep.subr.bf16.mxu0 0
    %1047 = vmatpush1.bf16.msra.mxu0 %v566
    %1048 = vmatprep.subr.bf16.mxu0 0
    %1049 = vmatpush2.bf16.msra.mxu0 %v581
    %1050 = vmatprep.subr.bf16.mxu0 0
    %1051 = vmatpush2.bf16.msra.mxu0 %v580
    %1052 = vmatprep.subr.bf16.mxu0 0
    %1053 = vmatpush2.bf16.msra.mxu0 %v579
    %1054 = vmatprep.subr.bf16.mxu0 0
    %1055 = vmatpush2.bf16.msra.mxu0 %v578
    %1056 = vmatprep.subr.bf16.mxu0 0
    %1057 = vmatpush2.bf16.msra.mxu0 %v577
    %1058 = vmatprep.subr.bf16.mxu0 0
    %1059 = vmatpush2.bf16.msra.mxu0 %v576
    %1060 = vmatprep.subr.bf16.mxu0 0
    %1061 = vmatpush2.bf16.msra.mxu0 %v575
    %1062 = vmatprep.subr.bf16.mxu0 0
    %1063 = vmatpush2.bf16.msra.mxu0 %v574
    %1064 = vmatprep.mubr.bf16.mxu0 %v941
    %1065 = vmatmul.mubr.bf16.gmra.mxu0 %v940
    %v1066 = vpop.f32.mrf.mxu0
    %v1067 = vadd.f32 %v1027, %v1066
    %v1068 = vpop.f32.mrf.mxu0
    %v1069 = vpop.f32.mrf.mxu0
    %v1070 = vpop.f32.mrf.mxu0
    %1071 = vdwg.mxu0
    %1072 = vmatprep.subr.bf16.mxu0 0
    %1073 = vmatpush1.bf16.msra.mxu0 %v589
    %1074 = vmatprep.subr.bf16.mxu0 0
    %1075 = vmatpush1.bf16.msra.mxu0 %v588
    %1076 = vmatprep.subr.bf16.mxu0 0
    %1077 = vmatpush1.bf16.msra.mxu0 %v587
    %1078 = vmatprep.subr.bf16.mxu0 0
    %1079 = vmatpush1.bf16.msra.mxu0 %v586
    %1080 = vmatprep.subr.bf16.mxu0 0
    %1081 = vmatpush1.bf16.msra.mxu0 %v585
    %1082 = vmatprep.subr.bf16.mxu0 0
    %1083 = vmatpush1.bf16.msra.mxu0 %v584
    %1084 = vmatprep.subr.bf16.mxu0 0
    %1085 = vmatpush1.bf16.msra.mxu0 %v583
    %1086 = vmatprep.subr.bf16.mxu0 0
    %1087 = vmatpush1.bf16.msra.mxu0 %v582
    %1088 = vmatprep.subr.bf16.mxu0 0
    %1089 = vmatpush2.bf16.msra.mxu0 %v597
    %1090 = vmatprep.subr.bf16.mxu0 0
    %1091 = vmatpush2.bf16.msra.mxu0 %v596
    %1092 = vmatprep.subr.bf16.mxu0 0
    %1093 = vmatpush2.bf16.msra.mxu0 %v595
    %1094 = vmatprep.subr.bf16.mxu0 0
    %1095 = vmatpush2.bf16.msra.mxu0 %v594
    %1096 = vmatprep.subr.bf16.mxu0 0
    %1097 = vmatpush2.bf16.msra.mxu0 %v593
    %1098 = vmatprep.subr.bf16.mxu0 0
    %1099 = vmatpush2.bf16.msra.mxu0 %v592
    %1100 = vmatprep.subr.bf16.mxu0 0
    %1101 = vmatpush2.bf16.msra.mxu0 %v591
    %1102 = vmatprep.subr.bf16.mxu0 0
    %1103 = vmatpush2.bf16.msra.mxu0 %v590
    %1104 = vmatprep.mubr.bf16.mxu0 %v943
    %1105 = vmatmul.mubr.bf16.gmra.mxu0 %v942
    %v1106 = vpop.f32.mrf.mxu0
    %v1107 = vadd.f32 %v1067, %v1106
    %v1108 = vpop.f32.mrf.mxu0
    %v1109 = vpop.f32.mrf.mxu0
    %v1110 = vpop.f32.mrf.mxu0
    %1111 = vdwg.mxu0
    %v1112 = vmax.f32 %v1107, 0.0
    %v1113 = vpack.c.bf16 %v1112, %v1112
    %1114 = vmatprep.subr.bf16.mxu0 0
    %1115 = vmatpush1.bf16.msra.mxu0 %v869
    %1116 = vmatprep.subr.bf16.mxu0 0
    %1117 = vmatpush1.bf16.msra.mxu0 %v868
    %1118 = vmatprep.subr.bf16.mxu0 0
    %1119 = vmatpush1.bf16.msra.mxu0 %v867
    %1120 = vmatprep.subr.bf16.mxu0 0
    %1121 = vmatpush1.bf16.msra.mxu0 %v866
    %1122 = vmatprep.subr.bf16.mxu0 0
    %1123 = vmatpush1.bf16.msra.mxu0 %v865
    %1124 = vmatprep.subr.bf16.mxu0 0
    %1125 = vmatpush1.bf16.msra.mxu0 %v864
    %1126 = vmatprep.subr.bf16.mxu0 0
    %1127 = vmatpush1.bf16.msra.mxu0 %v863
    %1128 = vmatprep.subr.bf16.mxu0 0
    %1129 = vmatpush1.bf16.msra.mxu0 %v862
    %1130 = vmatprep.subr.bf16.mxu0 0
    %1131 = vmatpush2.bf16.msra.mxu0 0
    %1132 = vmatprep.subr.bf16.mxu0 0
    %1133 = vmatpush2.bf16.msra.mxu0 0
    %1134 = vmatprep.subr.bf16.mxu0 0
    %1135 = vmatpush2.bf16.msra.mxu0 0
    %1136 = vmatprep.subr.bf16.mxu0 0
    %1137 = vmatpush2.bf16.msra.mxu0 0
    %1138 = vmatprep.subr.bf16.mxu0 0
    %1139 = vmatpush2.bf16.msra.mxu0 0
    %1140 = vmatprep.subr.bf16.mxu0 0
    %1141 = vmatpush2.bf16.msra.mxu0 0
    %1142 = vmatprep.subr.bf16.mxu0 0
    %1143 = vmatpush2.bf16.msra.mxu0 0
    %1144 = vmatprep.subr.bf16.mxu0 0
    %1145 = vmatpush2.bf16.msra.mxu0 0
    %1146 = vmatprep.mubr.bf16.mxu0 0
    %1147 = vmatmul.mubr.bf16.gmra.mxu0 %v1113
    %v1148 = vpop.f32.mrf.mxu0
    %v1149 = vadd.f32 %v828, %v1148
    %v1150 = vpop.f32.mrf.mxu0
    %v1151 = vpop.f32.mrf.mxu0
    %v1152 = vpop.f32.mrf.mxu0
    %1153 = vdwg.mxu0
    %v1154 = vpack.c.bf16 %v1149, %v1149
    %1155 = vst [vmem:[#allocation12] sm:$0xf] %v1154
    %v1156 = vld [vmem:[#allocation7] sm:$0xff]
    %v1157 = vld [vmem:[#allocation7 + $0x8] sm:$0xff]
    %v1158 = vld [vmem:[#allocation7 + $0x10] sm:$0xff]
    %v1159 = vld [vmem:[#allocation7 + $0x18] sm:$0xff]
    %v1164 = vunpack.c.l.b16 %v1156
    %v1165 = vunpack.c.h.b16 %v1156
    %v1166 = vunpack.c.l.b16 %v1157
    %v1167 = vunpack.c.h.b16 %v1157
    %v1168 = vunpack.c.l.b16 %v1158
    %v1169 = vunpack.c.h.b16 %v1158
    %v1170 = vunpack.c.l.b16 %v1159
    %v1171 = vunpack.c.h.b16 %v1159
    %v1172 = vpack.c.b16 %v1164, %v1164
    %v1173 = vpack.c.b16 %v1165, %v1165
    %v1174 = vpack.c.b16 %v1166, %v1166
    %v1175 = vpack.c.b16 %v1167, %v1167
    %v1176 = vpack.c.b16 %v1168, %v1168
    %v1177 = vpack.c.b16 %v1169, %v1169
    %v1178 = vpack.c.b16 %v1170, %v1170
    %v1179 = vpack.c.b16 %v1171, %v1171
    %1188 = vmatprep.subr.bf16.mxu0 0
    %1189 = vmatpush1.bf16.msra.mxu0 %v541
    %1190 = vmatprep.subr.bf16.mxu0 0
    %1191 = vmatpush1.bf16.msra.mxu0 %v540
    %1192 = vmatprep.subr.bf16.mxu0 0
    %1193 = vmatpush1.bf16.msra.mxu0 %v539
    %1194 = vmatprep.subr.bf16.mxu0 0
    %1195 = vmatpush1.bf16.msra.mxu0 %v538
    %1196 = vmatprep.subr.bf16.mxu0 0
    %1197 = vmatpush1.bf16.msra.mxu0 %v537
    %1198 = vmatprep.subr.bf16.mxu0 0
    %1199 = vmatpush1.bf16.msra.mxu0 %v536
    %1200 = vmatprep.subr.bf16.mxu0 0
    %1201 = vmatpush1.bf16.msra.mxu0 %v535
    %1202 = vmatprep.subr.bf16.mxu0 0
    %1203 = vmatpush1.bf16.msra.mxu0 %v534
    %1204 = vmatprep.subr.bf16.mxu0 0
    %1205 = vmatpush2.bf16.msra.mxu0 %v549
    %1206 = vmatprep.subr.bf16.mxu0 0
    %1207 = vmatpush2.bf16.msra.mxu0 %v548
    %1208 = vmatprep.subr.bf16.mxu0 0
    %1209 = vmatpush2.bf16.msra.mxu0 %v547
    %1210 = vmatprep.subr.bf16.mxu0 0
    %1211 = vmatpush2.bf16.msra.mxu0 %v546
    %1212 = vmatprep.subr.bf16.mxu0 0
    %1213 = vmatpush2.bf16.msra.mxu0 %v545
    %1214 = vmatprep.subr.bf16.mxu0 0
    %1215 = vmatpush2.bf16.msra.mxu0 %v544
    %1216 = vmatprep.subr.bf16.mxu0 0
    %1217 = vmatpush2.bf16.msra.mxu0 %v543
    %1218 = vmatprep.subr.bf16.mxu0 0
    %1219 = vmatpush2.bf16.msra.mxu0 %v542
    %1220 = vmatprep.mubr.bf16.mxu0 %v1173
    %1221 = vmatmul.mubr.bf16.gmra.mxu0 %v1172
    %v1222 = vpop.f32.mrf.mxu0
    %v1223 = vadd.f32 %v248, %v1222
    %v1224 = vpop.f32.mrf.mxu0
    %v1225 = vpop.f32.mrf.mxu0
    %v1226 = vpop.f32.mrf.mxu0
    %1227 = vdwg.mxu0
    %1228 = vmatprep.subr.bf16.mxu0 0
    %1229 = vmatpush1.bf16.msra.mxu0 %v557
    %1230 = vmatprep.subr.bf16.mxu0 0
    %1231 = vmatpush1.bf16.msra.mxu0 %v556
    %1232 = vmatprep.subr.bf16.mxu0 0
    %1233 = vmatpush1.bf16.msra.mxu0 %v555
    %1234 = vmatprep.subr.bf16.mxu0 0
    %1235 = vmatpush1.bf16.msra.mxu0 %v554
    %1236 = vmatprep.subr.bf16.mxu0 0
    %1237 = vmatpush1.bf16.msra.mxu0 %v553
    %1238 = vmatprep.subr.bf16.mxu0 0
    %1239 = vmatpush1.bf16.msra.mxu0 %v552
    %1240 = vmatprep.subr.bf16.mxu0 0
    %1241 = vmatpush1.bf16.msra.mxu0 %v551
    %1242 = vmatprep.subr.bf16.mxu0 0
    %1243 = vmatpush1.bf16.msra.mxu0 %v550
    %1244 = vmatprep.subr.bf16.mxu0 0
    %1245 = vmatpush2.bf16.msra.mxu0 %v565
    %1246 = vmatprep.subr.bf16.mxu0 0
    %1247 = vmatpush2.bf16.msra.mxu0 %v564
    %1248 = vmatprep.subr.bf16.mxu0 0
    %1249 = vmatpush2.bf16.msra.mxu0 %v563
    %1250 = vmatprep.subr.bf16.mxu0 0
    %1251 = vmatpush2.bf16.msra.mxu0 %v562
    %1252 = vmatprep.subr.bf16.mxu0 0
    %1253 = vmatpush2.bf16.msra.mxu0 %v561
    %1254 = vmatprep.subr.bf16.mxu0 0
    %1255 = vmatpush2.bf16.msra.mxu0 %v560
    %1256 = vmatprep.subr.bf16.mxu0 0
    %1257 = vmatpush2.bf16.msra.mxu0 %v559
    %1258 = vmatprep.subr.bf16.mxu0 0
    %1259 = vmatpush2.bf16.msra.mxu0 %v558
    %1260 = vmatprep.mubr.bf16.mxu0 %v1175
    %1261 = vmatmul.mubr.bf16.gmra.mxu0 %v1174
    %v1262 = vpop.f32.mrf.mxu0
    %v1263 = vadd.f32 %v1223, %v1262
    %v1264 = vpop.f32.mrf.mxu0
    %v1265 = vpop.f32.mrf.mxu0
    %v1266 = vpop.f32.mrf.mxu0
    %1267 = vdwg.mxu0
    %1268 = vmatprep.subr.bf16.mxu0 0
    %1269 = vmatpush1.bf16.msra.mxu0 %v573
    %1270 = vmatprep.subr.bf16.mxu0 0
    %1271 = vmatpush1.bf16.msra.mxu0 %v572
    %1272 = vmatprep.subr.bf16.mxu0 0
    %1273 = vmatpush1.bf16.msra.mxu0 %v571
    %1274 = vmatprep.subr.bf16.mxu0 0
    %1275 = vmatpush1.bf16.msra.mxu0 %v570
    %1276 = vmatprep.subr.bf16.mxu0 0
    %1277 = vmatpush1.bf16.msra.mxu0 %v569
    %1278 = vmatprep.subr.bf16.mxu0 0
    %1279 = vmatpush1.bf16.msra.mxu0 %v568
    %1280 = vmatprep.subr.bf16.mxu0 0
    %1281 = vmatpush1.bf16.msra.mxu0 %v567
    %1282 = vmatprep.subr.bf16.mxu0 0
    %1283 = vmatpush1.bf16.msra.mxu0 %v566
    %1284 = vmatprep.subr.bf16.mxu0 0
    %1285 = vmatpush2.bf16.msra.mxu0 %v581
    %1286 = vmatprep.subr.bf16.mxu0 0
    %1287 = vmatpush2.bf16.msra.mxu0 %v580
    %1288 = vmatprep.subr.bf16.mxu0 0
    %1289 = vmatpush2.bf16.msra.mxu0 %v579
    %1290 = vmatprep.subr.bf16.mxu0 0
    %1291 = vmatpush2.bf16.msra.mxu0 %v578
    %1292 = vmatprep.subr.bf16.mxu0 0
    %1293 = vmatpush2.bf16.msra.mxu0 %v577
    %1294 = vmatprep.subr.bf16.mxu0 0
    %1295 = vmatpush2.bf16.msra.mxu0 %v576
    %1296 = vmatprep.subr.bf16.mxu0 0
    %1297 = vmatpush2.bf16.msra.mxu0 %v575
    %1298 = vmatprep.subr.bf16.mxu0 0
    %1299 = vmatpush2.bf16.msra.mxu0 %v574
    %1300 = vmatprep.mubr.bf16.mxu0 %v1177
    %1301 = vmatmul.mubr.bf16.gmra.mxu0 %v1176
    %v1302 = vpop.f32.mrf.mxu0
    %v1303 = vadd.f32 %v1263, %v1302
    %v1304 = vpop.f32.mrf.mxu0
    %v1305 = vpop.f32.mrf.mxu0
    %v1306 = vpop.f32.mrf.mxu0
    %1307 = vdwg.mxu0
    %1308 = vmatprep.subr.bf16.mxu0 0
    %1309 = vmatpush1.bf16.msra.mxu0 %v589
    %1310 = vmatprep.subr.bf16.mxu0 0
    %1311 = vmatpush1.bf16.msra.mxu0 %v588
    %1312 = vmatprep.subr.bf16.mxu0 0
    %1313 = vmatpush1.bf16.msra.mxu0 %v587
    %1314 = vmatprep.subr.bf16.mxu0 0
    %1315 = vmatpush1.bf16.msra.mxu0 %v586
    %1316 = vmatprep.subr.bf16.mxu0 0
    %1317 = vmatpush1.bf16.msra.mxu0 %v585
    %1318 = vmatprep.subr.bf16.mxu0 0
    %1319 = vmatpush1.bf16.msra.mxu0 %v584
    %1320 = vmatprep.subr.bf16.mxu0 0
    %1321 = vmatpush1.bf16.msra.mxu0 %v583
    %1322 = vmatprep.subr.bf16.mxu0 0
    %1323 = vmatpush1.bf16.msra.mxu0 %v582
    %1324 = vmatprep.subr.bf16.mxu0 0
    %1325 = vmatpush2.bf16.msra.mxu0 %v597
    %1326 = vmatprep.subr.bf16.mxu0 0
    %1327 = vmatpush2.bf16.msra.mxu0 %v596
    %1328 = vmatprep.subr.bf16.mxu0 0
    %1329 = vmatpush2.bf16.msra.mxu0 %v595
    %1330 = vmatprep.subr.bf16.mxu0 0
    %1331 = vmatpush2.bf16.msra.mxu0 %v594
    %1332 = vmatprep.subr.bf16.mxu0 0
    %1333 = vmatpush2.bf16.msra.mxu0 %v593
    %1334 = vmatprep.subr.bf16.mxu0 0
    %1335 = vmatpush2.bf16.msra.mxu0 %v592
    %1336 = vmatprep.subr.bf16.mxu0 0
    %1337 = vmatpush2.bf16.msra.mxu0 %v591
    %1338 = vmatprep.subr.bf16.mxu0 0
    %1339 = vmatpush2.bf16.msra.mxu0 %v590
    %1340 = vmatprep.mubr.bf16.mxu0 %v1179
    %1341 = vmatmul.mubr.bf16.gmra.mxu0 %v1178
    %v1342 = vpop.f32.mrf.mxu0
    %v1343 = vadd.f32 %v1303, %v1342
    %v1344 = vpop.f32.mrf.mxu0
    %v1345 = vpop.f32.mrf.mxu0
    %v1346 = vpop.f32.mrf.mxu0
    %1347 = vdwg.mxu0
    %v1348 = vmax.f32 %v1343, 0.0
    %v1349 = vpack.c.bf16 %v1348, %v1348
    %1350 = vmatprep.subr.bf16.mxu0 0
    %1351 = vmatpush1.bf16.msra.mxu0 %v869
    %1352 = vmatprep.subr.bf16.mxu0 0
    %1353 = vmatpush1.bf16.msra.mxu0 %v868
    %1354 = vmatprep.subr.bf16.mxu0 0
    %1355 = vmatpush1.bf16.msra.mxu0 %v867
    %1356 = vmatprep.subr.bf16.mxu0 0
    %1357 = vmatpush1.bf16.msra.mxu0 %v866
    %1358 = vmatprep.subr.bf16.mxu0 0
    %1359 = vmatpush1.bf16.msra.mxu0 %v865
    %1360 = vmatprep.subr.bf16.mxu0 0
    %1361 = vmatpush1.bf16.msra.mxu0 %v864
    %1362 = vmatprep.subr.bf16.mxu0 0
    %1363 = vmatpush1.bf16.msra.mxu0 %v863
    %1364 = vmatprep.subr.bf16.mxu0 0
    %1365 = vmatpush1.bf16.msra.mxu0 %v862
    %1366 = vmatprep.subr.bf16.mxu0 0
    %1367 = vmatpush2.bf16.msra.mxu0 0
    %1368 = vmatprep.subr.bf16.mxu0 0
    %1369 = vmatpush2.bf16.msra.mxu0 0
    %1370 = vmatprep.subr.bf16.mxu0 0
    %1371 = vmatpush2.bf16.msra.mxu0 0
    %1372 = vmatprep.subr.bf16.mxu0 0
    %1373 = vmatpush2.bf16.msra.mxu0 0
    %1374 = vmatprep.subr.bf16.mxu0 0
    %1375 = vmatpush2.bf16.msra.mxu0 0
    %1376 = vmatprep.subr.bf16.mxu0 0
    %1377 = vmatpush2.bf16.msra.mxu0 0
    %1378 = vmatprep.subr.bf16.mxu0 0
    %1379 = vmatpush2.bf16.msra.mxu0 0
    %1380 = vmatprep.subr.bf16.mxu0 0
    %1381 = vmatpush2.bf16.msra.mxu0 0
    %1382 = vmatprep.mubr.bf16.mxu0 0
    %1383 = vmatmul.mubr.bf16.gmra.mxu0 %v1349
    %v1384 = vpop.f32.mrf.mxu0
    %v1385 = vadd.f32 %v828, %v1384
    %v1386 = vpop.f32.mrf.mxu0
    %v1387 = vpop.f32.mrf.mxu0
    %v1388 = vpop.f32.mrf.mxu0
    %1389 = vdwg.mxu0
    %v1390 = vpack.c.bf16 %v1385, %v1385
    %1391 = vst [vmem:[#allocation14] sm:$0xf] %v1390
    // Predicated region
    $region50: #{tpu_custom_call.1} parent=1 // pred_check
      _
    $region51: #{tpu_custom_call.1} parent=1 // pred_check_branch
      %1393 = sbr.rel (0) target = $region53
    $region52: #{tpu_custom_call.1} parent=1 // pred_region
      %s1395 = ssub.s32 64, 64
      %1396 = vsyncadd [#allocation4], %s1395
      %s1398 = sshll.u32 [#allocation11], 4
      %s1399 = int_to_ptr.vmem [resolvable:$true] %s1398
      %1401 = dma.vmem_to_hbm [thread:$0]  %s1399, 64, %s7, [#allocation4]
    $region53: #{tpu_custom_call.1} parent=1 // pred_fallthru
      _
    // Predicated region
    $region54: #{tpu_custom_call.1} parent=1 // pred_check
      _
    $region55: #{tpu_custom_call.1} parent=1 // pred_check_branch
      %1403 = sbr.rel (0) target = $region57
    $region56: #{tpu_custom_call.1} parent=1 // pred_region
      %s1405 = ssub.s32 64, 64
      %1406 = vsyncadd [#allocation13], %s1405
      %s1408 = sshll.u32 [#allocation12], 4
      %s1409 = int_to_ptr.vmem [resolvable:$true] %s1408
      %1411 = dma.vmem_to_hbm [thread:$0]  %s1409, 64, %s8, [#allocation13]
    $region57: #{tpu_custom_call.1} parent=1 // pred_fallthru
      _
    // Predicated region
    $region58: #{tpu_custom_call.1} parent=1 // pred_check
      _
    $region59: #{tpu_custom_call.1} parent=1 // pred_check_branch
      %1413 = sbr.rel (0) target = $region61
    $region60: #{tpu_custom_call.1} parent=1 // pred_region
      %s1415 = ssub.s32 64, 64
      %1416 = vsyncadd [#allocation13], %s1415
      %s1418 = sshll.u32 [#allocation14], 4
      %s1419 = int_to_ptr.vmem [resolvable:$true] %s1418
      %1421 = dma.vmem_to_hbm [thread:$0]  %s1419, 64, %s9, [#allocation13]
    $region61: #{tpu_custom_call.1} parent=1 // pred_fallthru
      _
    // Predicated region
    $region62: #{tpu_custom_call.1} parent=1 // pred_check
      _
    $region63: #{tpu_custom_call.1} parent=1 // pred_check_branch
      %1423 = sbr.rel (0) target = $region65
    $region64: #{tpu_custom_call.1} parent=1 // pred_region
      %1424 = dma.done [#allocation4], 64
    $region65: #{tpu_custom_call.1} parent=1 // pred_fallthru
      _
    // Predicated region
    $region66: #{tpu_custom_call.1} parent=1 // pred_check
      _
    $region67: #{tpu_custom_call.1} parent=1 // pred_check_branch
      %1426 = sbr.rel (0) target = $region69
    $region68: #{tpu_custom_call.1} parent=1 // pred_region
      %1427 = dma.done [#allocation13], 64
    $region69: #{tpu_custom_call.1} parent=1 // pred_fallthru
      _
    // Predicated region
    $region70: #{tpu_custom_call.1} parent=1 // pred_check
      _
    $region71: #{tpu_custom_call.1} parent=1 // pred_check_branch
      %1429 = sbr.rel (0) target = $region73
    $region72: #{tpu_custom_call.1} parent=1 // pred_region
      %1430 = dma.done [#allocation13], 64
    $region73: #{tpu_custom_call.1} parent=1 // pred_fallthru
      _
    %1431 = vsyncpa [#allocation3], 1
    %1432 = vsyncpa [#allocation6], 1
    %1433 = vsyncpa [#allocation9], 1
    %1434 = vsyncpa [#allocation4], 1
    %1435 = vsyncpa [#allocation13], 1

</llo_original>
